<compile_context>
chip_gen: v7x
topology: tpu7x:2x2x1
jax: 0.10.0
libtpu: 0.0.40
codegen_flags: <defaults>
</compile_context>

<pallas_src>
from functools import partial

import jax
import jax.numpy as jnp
import numpy as np
from jax.experimental import pallas as pl
from jax.experimental.pallas import tpu as pltpu


# ---------------------------------------------------------------------------
# Pass 1: accumulate per-head  kvd[h] = [ K_h^T V_h | K_h^T 1 ]  over tokens.
# ---------------------------------------------------------------------------
def _kv_accum_kernel(x_ref, wkv_ref, kvd_ref, *, H, d, compute_dtype):
    nt = pl.program_id(1)                       # token-tile index (reduction axis)
    hp = jax.lax.Precision.HIGHEST

    x = x_ref[0].astype(compute_dtype)          # (tN, C)  bf16
    C = x.shape[1]

    # Full-width, lane-dense bf16 GEMM with f32 accumulation: (tN, C) x (C, 2C).
    kv = jnp.maximum(
        jnp.dot(x, wkv_ref[...], preferred_element_type=jnp.float32), 0.0)
    k = kv[:, :C]                               # (tN, C) f32, >= 0
    v = kv[:, C:]                               # (tN, C) f32, >= 0

    # One whole-tile transpose of k (XLU), then per-head lane-dense-enough NN
    # dots; the denominator (column sum of k) is fused as an extra MXU column
    # by appending a ones column to v_h.
    kT = k.T                                    # (C, tN)
    ones = jnp.ones((x.shape[0], 1), jnp.float32)

    blocks = []
    for h in range(H):                          # H is small and static
        vh = jnp.concatenate([v[:, h * d:(h + 1) * d], ones], axis=1)   # (tN, d+1)
        blocks.append(
            jnp.dot(kT[h * d:(h + 1) * d, :], vh, precision=hp,
                    preferred_element_type=jnp.float32))                # (d, d+1)
    kvd = jnp.concatenate(blocks, axis=0)       # (H*d, d+1) f32

    @pl.when(nt == 0)
    def _():
        kvd_ref[...] = jnp.zeros_like(kvd_ref)

    kvd_ref[0] += kvd                           # f32 accumulation across token tiles


# ---------------------------------------------------------------------------
# Pass 2: q-contraction + normalization + single deferred output projection.
# ---------------------------------------------------------------------------
def _attn_proj_kernel(x_ref, wq_ref, kvd_ref, wp_ref, b_ref, o_ref,
                      *, H, d, eps, compute_dtype):
    hp = jax.lax.Precision.HIGHEST

    x = x_ref[0].astype(compute_dtype)          # (tN, C) bf16
    # Full-width, lane-dense bf16 GEMM with f32 accumulation: (tN, C) x (C, C).
    q = jnp.maximum(
        jnp.dot(x, wq_ref[...], preferred_element_type=jnp.float32), 0.0)   # (tN, C)

    kvd = kvd_ref[0]                            # (H*d, d+1) f32, resident

    heads = []
    for h in range(H):                          # tiny f32 core, kept at HIGHEST
        qh = q[:, h * d:(h + 1) * d]            # (tN, d)
        nd = jnp.dot(qh, kvd[h * d:(h + 1) * d, :], precision=hp,
                     preferred_element_type=jnp.float32)                    # (tN, d+1)
        heads.append(nd[:, :d] / (nd[:, d:d + 1] + eps))                    # (tN, d)
    proj_in = jnp.concatenate(heads, axis=1).astype(compute_dtype)          # (tN, C)

    # Single deferred lane-dense projection GEMM; bias added at the final write.
    y = jnp.dot(proj_in, wp_ref[...], preferred_element_type=jnp.float32)   # (tN, C)
    o_ref[0] = (y + b_ref[...]).astype(o_ref.dtype)


# ---------------------------------------------------------------------------
# Wrapper.
# ---------------------------------------------------------------------------
def _pick_token_tile(N, C):
    """Largest token tile that divides N and keeps an f32 (tile, C) slab small."""
    budget = 4 * 1024 * 1024                    # ~4 MiB per f32 (tile, C) buffer
    for t in (2048, 1024, 512, 256, 128, 64, 32, 16, 8):
        if N % t == 0 and t * C * 4 <= budget:
            return t
    # TODO(synk): ragged N falls back to a single full-N block (may be large).
    return N


def _vmem_limit_bytes(tn, C, x_itemsize, out_itemsize):
    # double-buffered x / out tiles + resident bf16 weights + f32 temporaries
    tiles = 2 * tn * C * x_itemsize + 2 * tn * C * out_itemsize
    weights = 3 * C * C * 2
    temps = 8 * tn * C * 4
    need = tiles + weights + temps + (2 << 20)
    return int(min(56 * (1 << 20), max(32 * (1 << 20), need)))


def triton_lite_mla_forward(x, qkv_weight, proj_weight, proj_bias, num_heads,
                            eps=1e-15, compute_dtype=jnp.bfloat16):
    """x: (B, N, C); qkv_weight: (3C, C); proj_weight: (C, C); proj_bias: (C,)."""
    B, N, C = x.shape
    H = num_heads
    assert C % H == 0, "dim must be divisible by num_heads"
    d = C // H

    tn = _pick_token_tile(N, C)
    n_tiles = N // tn if N % tn == 0 else 1
    vlim = _vmem_limit_bytes(tn, C, jnp.dtype(x.dtype).itemsize,
                             jnp.dtype(x.dtype).itemsize)

    # Glue: pre-transpose + cast weights once on the host side (no real compute).
    wq_t = qkv_weight[0 * C:1 * C].T.astype(compute_dtype)     # (C, C)   -> q
    wkv_t = qkv_weight[1 * C:3 * C].T.astype(compute_dtype)    # (C, 2C)  -> k, v
    wp_t = proj_weight.T.astype(compute_dtype)                 # (C, C)
    bias = proj_bias.reshape(1, C).astype(jnp.float32)

    # ---- pass 1: per-head [K^T V | K^T 1] accumulated over token tiles ----
    kvd = pl.pallas_call(
        partial(_kv_accum_kernel, H=H, d=d, compute_dtype=compute_dtype),
        out_shape=jax.ShapeDtypeStruct((B, H * d, d + 1), jnp.float32),
        grid_spec=pltpu.PrefetchScalarGridSpec(
            num_scalar_prefetch=0,
            grid=(B, n_tiles),
            in_specs=[
                pl.BlockSpec((1, tn, C), lambda b, n: (b, n, 0)),     # x tile
                pl.BlockSpec((C, 2 * C), lambda b, n: (0, 0)),        # W_kv (resident)
            ],
            out_specs=pl.BlockSpec((1, H * d, d + 1), lambda b, n: (b, 0, 0)),
        ),
        compiler_params=pltpu.CompilerParams(
            dimension_semantics=("parallel", "arbitrary"),
            vmem_limit_bytes=vlim),
    )(x, wkv_t)

    # ---- pass 2: q, normalize, single deferred projection + bias ----
    y = pl.pallas_call(
        partial(_attn_proj_kernel, H=H, d=d, eps=eps, compute_dtype=compute_dtype),
        out_shape=jax.ShapeDtypeStruct((B, N, C), x.dtype),
        grid_spec=pltpu.PrefetchScalarGridSpec(
            num_scalar_prefetch=0,
            grid=(B, n_tiles),
            in_specs=[
                pl.BlockSpec((1, tn, C), lambda b, n: (b, n, 0)),         # x tile
                pl.BlockSpec((C, C), lambda b, n: (0, 0)),                # W_q (resident)
                pl.BlockSpec((1, H * d, d + 1), lambda b, n: (b, 0, 0)),  # kvd
                pl.BlockSpec((C, C), lambda b, n: (0, 0)),                # W_proj (resident)
                pl.BlockSpec((1, C), lambda b, n: (0, 0)),                # bias
            ],
            out_specs=pl.BlockSpec((1, tn, C), lambda b, n: (b, n, 0)),
        ),
        compiler_params=pltpu.CompilerParams(
            dimension_semantics=("parallel", "parallel"),
            vmem_limit_bytes=vlim),
    )(x, wq_t, kvd, wp_t, bias)
    return y


# ---------------------------------------------------------------------------
# References for validation.
# ---------------------------------------------------------------------------
def _ref_forward_np(x, qkv_weight, proj_weight, proj_bias, H, eps):
    """float64 numpy reference matching the PyTorch forward exactly."""
    x = np.asarray(x, np.float64)
    W = np.asarray(qkv_weight, np.float64)
    Wp = np.asarray(proj_weight, np.float64)
    bp = np.asarray(proj_bias, np.float64)
    B, N, C = x.shape
    d = C // H
    qkv = np.maximum(x @ W.T, 0.0)                                  # (B, N, 3C)
    q = qkv[..., 0 * C:1 * C].reshape(B, N, H, d)
    k = qkv[..., 1 * C:2 * C].reshape(B, N, H, d)
    v = qkv[..., 2 * C:3 * C].reshape(B, N, H, d)
    v_pad = np.concatenate([v, np.ones((B, N, H, 1))], axis=-1)     # (B, N, H, d+1)
    vk = np.einsum('bnhi,bnhj->bhij', v_pad, k)                     # (B, H, d+1, d)
    vk_q = np.einsum('bhij,bnhj->bnhi', vk, q)                      # (B, N, H, d+1)
    out = vk_q[..., :d] / (vk_q[..., d:] + eps)                     # (B, N, H, d)
    return out.reshape(B, N, C) @ Wp.T + bp


def _ref_forward_jax_mixed(x, qkv_weight, proj_weight, proj_bias, H, eps,
                           compute_dtype=jnp.bfloat16):
    """Pure-JAX reference with the SAME mixed precision as the kernel
    (bf16 GEMMs with f32 accumulation, f32 linear-attention core)."""
    B, N, C = x.shape
    d = C // H
    hp = jax.lax.Precision.HIGHEST
    xb = x.astype(compute_dtype)
    q = jnp.maximum(jnp.dot(xb, qkv_weight[:C].T.astype(compute_dtype),
                            preferred_element_type=jnp.float32), 0.0)
    kv = jnp.maximum(jnp.dot(xb, qkv_weight[C:].T.astype(compute_dtype),
                             preferred_element_type=jnp.float32), 0.0)
    k, v = kv[..., :C], kv[..., C:]
    q = q.reshape(B, N, H, d)
    k = k.reshape(B, N, H, d)
    v = v.reshape(B, N, H, d)
    vpad = jnp.concatenate([v, jnp.ones((B, N, H, 1), jnp.float32)], axis=-1)
    kvd = jnp.einsum('bnhj,bnhi->bhji', k, vpad, precision=hp)      # (B, H, d, d+1)
    nd = jnp.einsum('bnhj,bhji->bnhi', q, kvd, precision=hp)        # (B, N, H, d+1)
    out = nd[..., :d] / (nd[..., d:] + eps)
    proj_in = out.reshape(B, N, C).astype(compute_dtype)
    y = jnp.dot(proj_in, proj_weight.T.astype(compute_dtype),
                preferred_element_type=jnp.float32) + proj_bias.astype(jnp.float32)
    return y.astype(x.dtype)


if __name__ == "__main__":
    B, N, dim, num_heads = 2, 16, 32, 4
    eps = 1e-15

    key = jax.random.PRNGKey(0)
    kx, kqkv, kpw, kpb = jax.random.split(key, 4)
    bound = 1.0 / np.sqrt(dim)
    x = jax.random.normal(kx, (B, N, dim), jnp.float32)
    qkv_weight = jax.random.uniform(kqkv, (3 * dim, dim), jnp.float32, -bound, bound)
    proj_weight = jax.random.uniform(kpw, (dim, dim), jnp.float32, -bound, bound)
    proj_bias = jax.random.uniform(kpb, (dim,), jnp.float32, -bound, bound)

    y = triton_lite_mla_forward(x, qkv_weight, proj_weight, proj_bias, num_heads, eps)
    y = jax.block_until_ready(y)
    y64 = np.asarray(y, np.float64)

    # (1) tight check vs a JAX reference using the same mixed-precision math.
    y_mixed = _ref_forward_jax_mixed(x, qkv_weight, proj_weight, proj_bias,
                                     num_heads, eps)
    np.testing.assert_allclose(y64, np.asarray(y_mixed, np.float64),
                               rtol=5e-3, atol=1e-3)

    # (2) loose check vs the exact float64 PyTorch-equivalent math (bf16 GEMMs
    #     match the module's autocast path, hence the wider tolerance).
    y_exact = _ref_forward_np(x, qkv_weight, proj_weight, proj_bias, num_heads, eps)
    np.testing.assert_allclose(y64, y_exact, rtol=2e-2, atol=2e-2)

    print("KERNEL_OK")
</pallas_src>

<mosaic_0001>
module attributes {stable_mosaic.version = 11 : i64} {
  func.func @_kv_accum_kernel(%arg0: i32, %arg1: i32, %arg2: memref<1x16x32xf32, #tpu.memory_space<vmem>>, %arg3: memref<32x64xbf16, #tpu.memory_space<vmem>>, %arg4: memref<1x32x9xf32, #tpu.memory_space<vmem>>) attributes {dimension_semantics = [#tpu.dimension_semantics<parallel>, #tpu.dimension_semantics<arbitrary>], iteration_bounds = array<i64: 2, 1>, scalar_prefetch = 0 : i64, scratch_operands = 0 : i64, tpu.core_type = #tpu.core_type<tc>, window_params = [{transform_indices = @transform_0, window_bounds = array<i64: 1, 16, 32>}, {pipeline_mode = #tpu.pipeline_mode<synchronous>, transform_indices = @transform_1, window_bounds = array<i64: 32, 64>}, {transform_indices = @transform_2, window_bounds = array<i64: 1, 32, 9>}]} {
    %c0 = arith.constant 0 : index
    %c0_0 = arith.constant 0 : index
    %c0_1 = arith.constant 0 : index
    %0 = vector.load %arg2[%c0, %c0_0, %c0_1] : memref<1x16x32xf32, #tpu.memory_space<vmem>>, vector<1x16x32xf32>
    %1 = vector.shape_cast %0 : vector<1x16x32xf32> to vector<16x32xf32>
    %2 = arith.truncf %1 : vector<16x32xf32> to vector<16x32xbf16>
    %c0_2 = arith.constant 0 : index
    %c0_3 = arith.constant 0 : index
    %3 = vector.load %arg3[%c0_2, %c0_3] : memref<32x64xbf16, #tpu.memory_space<vmem>>, vector<32x64xbf16>
    %cst = arith.constant dense<0.000000e+00> : vector<16x64xf32>
    %4 = tpu.matmul %2, %3, %cst {dimension_numbers = #tpu.dot_dimension_numbers<[1], [0], [0], [1], [0, 0, 1, 1], [], []>} : vector<16x32xbf16>, vector<32x64xbf16>, vector<16x64xf32> -> vector<16x64xf32>
    %cst_4 = arith.constant 0.000000e+00 : f32
    %5 = vector.broadcast %cst_4 : f32 to vector<16x64xf32>
    %6 = arith.maximumf %4, %5 : vector<16x64xf32>
    %7 = vector.extract_strided_slice %6 {offsets = [0, 0], sizes = [16, 32], strides = [1, 1]} : vector<16x64xf32> to vector<16x32xf32>
    %8 = vector.extract_strided_slice %6 {offsets = [0, 32], sizes = [16, 32], strides = [1, 1]} : vector<16x64xf32> to vector<16x32xf32>
    %9 = tpu.transpose %7, [1, 0] : vector<16x32xf32> -> vector<32x16xf32>
    %cst_5 = arith.constant 1.000000e+00 : f32
    %10 = vector.broadcast %cst_5 : f32 to vector<16x1xf32>
    %11 = vector.extract_strided_slice %8 {offsets = [0, 0], sizes = [16, 8], strides = [1, 1]} : vector<16x32xf32> to vector<16x8xf32>
    %12 = tpu.concatenate %11, %10 in 1 : vector<16x8xf32>, vector<16x1xf32> -> vector<16x9xf32>
    %13 = vector.extract_strided_slice %9 {offsets = [0, 0], sizes = [8, 16], strides = [1, 1]} : vector<32x16xf32> to vector<8x16xf32>
    %cst_6 = arith.constant dense<0.000000e+00> : vector<8x9xf32>
    %14 = tpu.matmul %13, %12, %cst_6 {dimension_numbers = #tpu.dot_dimension_numbers<[1], [0], [0], [1], [0, 0, 1, 1], [], []>, precision = #tpu.contract_precision<fp32>} : vector<8x16xf32>, vector<16x9xf32>, vector<8x9xf32> -> vector<8x9xf32>
    %15 = vector.extract_strided_slice %8 {offsets = [0, 8], sizes = [16, 8], strides = [1, 1]} : vector<16x32xf32> to vector<16x8xf32>
    %16 = tpu.concatenate %15, %10 in 1 : vector<16x8xf32>, vector<16x1xf32> -> vector<16x9xf32>
    %17 = vector.extract_strided_slice %9 {offsets = [8, 0], sizes = [8, 16], strides = [1, 1]} : vector<32x16xf32> to vector<8x16xf32>
    %cst_7 = arith.constant dense<0.000000e+00> : vector<8x9xf32>
    %18 = tpu.matmul %17, %16, %cst_7 {dimension_numbers = #tpu.dot_dimension_numbers<[1], [0], [0], [1], [0, 0, 1, 1], [], []>, precision = #tpu.contract_precision<fp32>} : vector<8x16xf32>, vector<16x9xf32>, vector<8x9xf32> -> vector<8x9xf32>
    %19 = vector.extract_strided_slice %8 {offsets = [0, 16], sizes = [16, 8], strides = [1, 1]} : vector<16x32xf32> to vector<16x8xf32>
    %20 = tpu.concatenate %19, %10 in 1 : vector<16x8xf32>, vector<16x1xf32> -> vector<16x9xf32>
    %21 = vector.extract_strided_slice %9 {offsets = [16, 0], sizes = [8, 16], strides = [1, 1]} : vector<32x16xf32> to vector<8x16xf32>
    %cst_8 = arith.constant dense<0.000000e+00> : vector<8x9xf32>
    %22 = tpu.matmul %21, %20, %cst_8 {dimension_numbers = #tpu.dot_dimension_numbers<[1], [0], [0], [1], [0, 0, 1, 1], [], []>, precision = #tpu.contract_precision<fp32>} : vector<8x16xf32>, vector<16x9xf32>, vector<8x9xf32> -> vector<8x9xf32>
    %23 = vector.extract_strided_slice %8 {offsets = [0, 24], sizes = [16, 8], strides = [1, 1]} : vector<16x32xf32> to vector<16x8xf32>
    %24 = tpu.concatenate %23, %10 in 1 : vector<16x8xf32>, vector<16x1xf32> -> vector<16x9xf32>
    %25 = vector.extract_strided_slice %9 {offsets = [24, 0], sizes = [8, 16], strides = [1, 1]} : vector<32x16xf32> to vector<8x16xf32>
    %cst_9 = arith.constant dense<0.000000e+00> : vector<8x9xf32>
    %26 = tpu.matmul %25, %24, %cst_9 {dimension_numbers = #tpu.dot_dimension_numbers<[1], [0], [0], [1], [0, 0, 1, 1], [], []>, precision = #tpu.contract_precision<fp32>} : vector<8x16xf32>, vector<16x9xf32>, vector<8x9xf32> -> vector<8x9xf32>
    %27 = tpu.concatenate %14, %18, %22, %26 in 0 : vector<8x9xf32>, vector<8x9xf32>, vector<8x9xf32>, vector<8x9xf32> -> vector<32x9xf32>
    %c0_i32 = arith.constant 0 : i32
    %28 = arith.cmpi eq, %arg1, %c0_i32 : i32
    %29 = arith.extui %28 : i1 to i32
    %c0_i32_10 = arith.constant 0 : i32
    %30 = arith.cmpi ne, %29, %c0_i32_10 : i32
    scf.if %30 {
      %cst_17 = arith.constant 0.000000e+00 : f32
      %37 = vector.broadcast %cst_17 : f32 to vector<1x32x9xf32>
      %c0_18 = arith.constant 0 : index
      %c0_19 = arith.constant 0 : index
      %c0_20 = arith.constant 0 : index
      %38 = vector.load %arg4[%c0_18, %c0_19, %c0_20] : memref<1x32x9xf32, #tpu.memory_space<vmem>>, vector<1x32x9xf32>
      tpu.vector_store %arg4[%c0_18, %c0_19, %c0_20], %37 {strides = array<i32>} : memref<1x32x9xf32, #tpu.memory_space<vmem>>, vector<1x32x9xf32>,
    } else {
    }
    %c0_11 = arith.constant 0 : index
    %c0_12 = arith.constant 0 : index
    %c0_13 = arith.constant 0 : index
    %31 = vector.load %arg4[%c0_11, %c0_12, %c0_13] : memref<1x32x9xf32, #tpu.memory_space<vmem>>, vector<1x32x9xf32>
    %32 = vector.shape_cast %31 : vector<1x32x9xf32> to vector<32x9xf32>
    %33 = arith.addf %32, %27 : vector<32x9xf32>
    %c0_14 = arith.constant 0 : index
    %c0_15 = arith.constant 0 : index
    %c0_16 = arith.constant 0 : index
    %34 = vector.load %arg4[%c0_14, %c0_15, %c0_16] : memref<1x32x9xf32, #tpu.memory_space<vmem>>, vector<1x32x9xf32>
    %35 = vector.shape_cast %34 : vector<1x32x9xf32> to vector<32x9xf32>
    %36 = vector.shape_cast %33 : vector<32x9xf32> to vector<1x32x9xf32>
    tpu.vector_store %arg4[%c0_14, %c0_15, %c0_16], %36 {strides = array<i32>} : memref<1x32x9xf32, #tpu.memory_space<vmem>>, vector<1x32x9xf32>,
    return
  }
  func.func @transform_0(%arg0: i32, %arg1: i32) -> (i32, i32, i32) {
    %c0_i32 = arith.constant 0 : i32
    %c0_i32_0 = arith.constant 0 : i32
    return %arg0, %arg1, %c0_i32 : i32, i32, i32
  }
  func.func @transform_1(%arg0: i32, %arg1: i32) -> (i32, i32) {
    %c0_i32 = arith.constant 0 : i32
    %c0_i32_0 = arith.constant 0 : i32
    %c0_i32_1 = arith.constant 0 : i32
    return %c0_i32, %c0_i32_0 : i32, i32
  }
  func.func @transform_2(%arg0: i32, %arg1: i32) -> (i32, i32, i32) {
    %c0_i32 = arith.constant 0 : i32
    %c0_i32_0 = arith.constant 0 : i32
    %c0_i32_1 = arith.constant 0 : i32
    return %arg0, %c0_i32, %c0_i32_0 : i32, i32, i32
  }
}

</mosaic_0001>

<llo_original>
// kernel: tpu_custom_call.1
$region0: #{tpu_custom_call.1}
  #allocation0 [shape = 'u32[]', space=smem, size = 0x4, offset = 0x4, fixed_abs, tag = 'smem constant byte address 0x4 - core index']
  #allocation1 [shape = 'u32[144,128]{1,0:T(1,128)}', space=vmem, size = 0x12000, scoped, tag = 'internal scratch']
  %s0 = inlined_call_operand.hbm [shape: f32[2,16,32], index: 0, kind: input, shape index: {}]
  %s1 = inlined_call_operand.hbm [shape: bf16[32,64], index: 1, kind: input, shape index: {}]
  %s2 = inlined_call_operand.vmem [shape: f32[2,32,9], index: 2, kind: output, shape index: {}]
  %s3 = sld [smem:[#allocation0]]
  $region53: #{tpu_custom_call.1} parent=0
    _
  %s5 = ssub.s32 1, %s3
  %s6 = scalar_select 0, %s5, %s3
  $region1: #{tpu_custom_call.1} parent=0
    #allocation2 [shape = 'u8[16384]{0}', space=vmem, size = 0x4000, scoped, tag = 'input window, operand 0']
    #allocation3 [shape = 's32[2]{0}', space=sflag, size = 0x8, scoped, tag = 'scoped memory for tpu_custom_call.1']
    #allocation4 [shape = 'u8[8192]{0}', space=vmem, size = 0x2000, scoped, tag = 'input window, operand 1, single buffered']
    #allocation5 [shape = 's32[1]{0}', space=sflag, size = 0x4, scoped, tag = 'scoped memory for tpu_custom_call.1']
    %7 = vsyncpa [#allocation3], 0
    %s8 = scalar_lea.sflag [#allocation3], 1
    %9 = vsyncpa %s8, 0
    %10 = vsyncpa [#allocation5], 0
    loop: start=0, step=1, limit=4
    $region2: #{tpu_custom_call.1} parent=1 // loop_pre_header
      _
    $region3: #{tpu_custom_call.1} parent=1 // loop_header
      %s12 = sphi 0, %s16
      %p13 = scmp.ge.s32.totalorder %s12, 4
      %s19 = sphi 0, %s31
      %s20 = sphi 0, %s27
      %s21 = sphi 0, %s19
      %s22 = sphi 0, %s20
      %s23 = sphi 0, %s21
      %s24 = sphi 0, %s22
      %s36 = sphi 0, %s38
      %s39 = sphi 0, %s36
      %s40 = sphi 0, %s39
      %s56 = sphi 0, %s40
      %s60 = sphi 0, %s60
      %s62 = sphi 0, %s60
      %s63 = sphi 0, %s62
      %s77 = sphi 0, %s63
      %s83 = sphi 0, %s85
      %s86 = sphi 0, %s83
      %s87 = sphi 0, %s86
      %s103 = sphi 0, %s87
    $region4: #{tpu_custom_call.1} parent=1 // loop_header_branch
      %15 = sbr.rel (%p13) target = $region8
    $region5: #{tpu_custom_call.1} parent=1 // loop_body
      %s17 = ssub.s32 %s12, 1
      %s18 = ssub.s32 %s12, 2
      %s25 = sadd.s32 1, %s20
      %p26 = scmp.ge.s32.totalorder %s25, 1
      %s27 = scalar_select %p26, 0, %s25
      %s28 = sadd.s32 1, %s19
      %s29 = scalar_select %p26, %s28, %s19
      %p30 = scmp.ge.s32.totalorder %s29, 2
      %s31 = scalar_select %p30, 0, %s29
      %s32 = ssub.s32 %s19, %s31
      %s33 = ssub.s32 %s20, %s27
      %s34 = sor.u32 %s32, %s33
      %p35 = scmp.eq.s32.totalorder %s34, 0
      %s37 = sadd.s32 %s36, 1
      %s38 = scalar_select %p35, %s36, %s37
      %p41 = pneg %p35
      %p42 = scmp.eq.s32.totalorder %s12, 1
      %p43 = por %p41, %p42
      %p44 = scmp.ne.s32.totalorder %s36, %s39
      %p45 = scmp.eq.s32.totalorder %s12, 0
      %p46 = por %p44, %p45
      %p47 = scmp.ne.s32.totalorder %s36, %s39
      %p48 = scmp.eq.s32.totalorder %s17, 1
      %p49 = por %p47, %p48
      %p50 = scmp.ne.s32.totalorder %s39, %s40
      %p51 = scmp.eq.s32.totalorder %s17, 0
      %p52 = por %p50, %p51
      %p53 = scmp.ne.s32.totalorder %s39, %s40
      %p54 = scmp.eq.s32.totalorder %s18, 1
      %p55 = por %p53, %p54
      %p57 = scmp.ne.s32.totalorder %s40, %s56
      %p58 = scmp.eq.s32.totalorder %s18, 0
      %p59 = por %p57, %p58
      %s61 = sadd.s32 %s60, 1
      %p64 = scmp.eq.s32.totalorder %s12, 1
      %p65 = scmp.ne.s32.totalorder %s60, %s62
      %p66 = scmp.eq.s32.totalorder %s12, 0
      %p67 = por %p65, %p66
      %p68 = scmp.ne.s32.totalorder %s60, %s62
      %p69 = scmp.eq.s32.totalorder %s17, 1
      %p70 = por %p68, %p69
      %p71 = scmp.ne.s32.totalorder %s62, %s63
      %p72 = scmp.eq.s32.totalorder %s17, 0
      %p73 = por %p71, %p72
      %p74 = scmp.ne.s32.totalorder %s62, %s63
      %p75 = scmp.eq.s32.totalorder %s18, 1
      %p76 = por %p74, %p75
      %p78 = scmp.ne.s32.totalorder %s63, %s77
      %p79 = scmp.eq.s32.totalorder %s18, 0
      %p80 = por %p78, %p79
      %s81 = ssub.s32 %s19, %s31
      %p82 = scmp.eq.s32.totalorder %s81, 0
      %s84 = sadd.s32 %s83, 1
      %s85 = scalar_select %p82, %s83, %s84
      %p88 = pneg %p82
      %p89 = scmp.eq.s32.totalorder %s12, 1
      %p90 = por %p88, %p89
      %p91 = scmp.ne.s32.totalorder %s83, %s86
      %p92 = scmp.eq.s32.totalorder %s12, 0
      %p93 = por %p91, %p92
      %p94 = scmp.ne.s32.totalorder %s83, %s86
      %p95 = scmp.eq.s32.totalorder %s17, 1
      %p96 = por %p94, %p95
      %p97 = scmp.ne.s32.totalorder %s86, %s87
      %p98 = scmp.eq.s32.totalorder %s17, 0
      %p99 = por %p97, %p98
      %p100 = scmp.ne.s32.totalorder %s86, %s87
      %p101 = scmp.eq.s32.totalorder %s18, 1
      %p102 = por %p100, %p101
      %p104 = scmp.ne.s32.totalorder %s87, %s103
      %p105 = scmp.eq.s32.totalorder %s18, 0
      %p106 = por %p104, %p105
      %p107 = scmp.le.s32.totalorder 1, %s12
      %p108 = scmp.lt.s32.totalorder %s12, 3
      %p109 = pnand %p107, %p108
      %p110 = pneg %p109
      // Predicated region
      $region9: #{tpu_custom_call.1} parent=5 // pred_check
        _
      $region10: #{tpu_custom_call.1} parent=5 // pred_check_branch
        %112 = sbr.rel (%p109) target = $region12
      $region11: #{tpu_custom_call.1} parent=5 // pred_region
        %s113 = ssub.s32 %s12, 1
        // Predicated region
        $region13: #{tpu_custom_call.1} parent=11 // pred_check
          %p114 = pneg %p73
        $region14: #{tpu_custom_call.1} parent=11 // pred_check_branch
          %116 = sbr.rel (%p114) target = $region16
        $region15: #{tpu_custom_call.1} parent=11 // pred_region
          %s118 = ssub.s32 256, 256
          %119 = vsyncadd [#allocation5], %s118
          %s120 = sshll.u32 [#allocation4], 4
          %s121 = int_to_ptr.vmem [resolvable:$true] %s120
          %126 = dma.hbm_to_vmem [thread:$0]  %s1, 256, %s121, [#allocation5], 64, 64, 4
        $region16: #{tpu_custom_call.1} parent=11 // pred_fallthru
          _
      $region12: #{tpu_custom_call.1} parent=5 // pred_fallthru
        _
      %p127 = scmp.lt.s32.totalorder %s12, 2
      // Predicated region
      $region17: #{tpu_custom_call.1} parent=5 // pred_check
        %p128 = pneg %p127
      $region18: #{tpu_custom_call.1} parent=5 // pred_check_branch
        %130 = sbr.rel (%p128) target = $region20
      $region19: #{tpu_custom_call.1} parent=5 // pred_region
        // Predicated region
        $region21: #{tpu_custom_call.1} parent=19 // pred_check
          %p131 = pneg %p46
        $region22: #{tpu_custom_call.1} parent=19 // pred_check_branch
          %133 = sbr.rel (%p131) target = $region24
        $region23: #{tpu_custom_call.1} parent=19 // pred_region
          %s134 = sand.u32 %s36, 1
          %s135 = scalar_lea.sflag [#allocation3], %s134
          %s136 = sand.u32 %s36, 1
          %s137 = smul.addr %s136, 16
          %s138 = scalar_lea.vmem [#allocation2], %s137
          %s139 = smul.u32 2, %s20
          %s141 = ssub.s32 256, 256
          %142 = vsyncadd %s135, %s141
          %s143 = smul.addr %s19, 2
          %s144 = sadd.s32 %s139, %s143
          %s145 = smul.addr %s144, 128
          %s146 = scalar_lea.hbm %s0, %s145
          %s147 = sshll.u32 %s138, 4
          %s148 = int_to_ptr.vmem [resolvable:$true] %s147
          %153 = dma.hbm_to_vmem [thread:$0]  %s146, 256, %s148, %s135, 128, 128, 8
        $region24: #{tpu_custom_call.1} parent=19 // pred_fallthru
          _
      $region20: #{tpu_custom_call.1} parent=5 // pred_fallthru
        _
      %p154 = scmp.le.s32.totalorder 1, %s12
      %p155 = scmp.lt.s32.totalorder %s12, 3
      %p156 = pnand %p154, %p155
      %p157 = pneg %p156
      // Predicated region
      $region25: #{tpu_custom_call.1} parent=5 // pred_check
        _
      $region26: #{tpu_custom_call.1} parent=5 // pred_check_branch
        %159 = sbr.rel (%p156) target = $region28
      $region27: #{tpu_custom_call.1} parent=5 // pred_region
        %s160 = ssub.s32 %s12, 1
        %s161 = sand.u32 %s39, 1
        %s162 = scalar_lea.sflag [#allocation3], %s161
        %s163 = sand.u32 %s39, 1
        %s164 = smul.addr %s163, 16
        %s165 = scalar_lea.vmem [#allocation2], %s164
        // Predicated region
        $region29: #{tpu_custom_call.1} parent=27 // pred_check
          %p166 = pneg %p52
        $region30: #{tpu_custom_call.1} parent=27 // pred_check_branch
          %168 = sbr.rel (%p166) target = $region32
        $region31: #{tpu_custom_call.1} parent=27 // pred_region
          %169 = dma.done %s162, 256
        $region32: #{tpu_custom_call.1} parent=27 // pred_fallthru
          _
        // Predicated region
        $region33: #{tpu_custom_call.1} parent=27 // pred_check
          %p170 = pneg %p73
        $region34: #{tpu_custom_call.1} parent=27 // pred_check_branch
          %172 = sbr.rel (%p170) target = $region36
        $region35: #{tpu_custom_call.1} parent=27 // pred_region
          %173 = dma.done [#allocation5], 256
        $region36: #{tpu_custom_call.1} parent=27 // pred_fallthru
          _
        %s174 = sand.u32 %s39, 1
        %s175 = scalar_lea.sflag [#allocation3], %s174
        %s176 = sand.u32 %s39, 1
        %s177 = smul.addr %s176, 16
        %s178 = scalar_lea.vmem [#allocation2], %s177
        %p179 = pneg %p52
        %p180 = pneg %p49
        %p181 = pneg %p73
        %p182 = pneg %p70
        %p183 = pneg %p99
        %p184 = pneg %p96
        %p185 = scmp.lt.s32.totalorder %s21, 1
        %s186 = scalar_select %p185, %s21, 1
        %s187 = smul.addr %s186, 4
        %s188 = smul.addr %s187, 8
        %s189 = scalar_lea.vmem %s2, %s188
        %s190 = smul.u32 2, %s22
        %p191 = scmp.lt.s32.totalorder %s21, 1
        %s192 = scalar_select %p191, %s21, 1
        %s193 = smul.addr %s192, 4
        %s194 = smul.addr %s193, 8
        %s195 = scalar_lea.vmem %s2, %s194
        %v197 = vld [vmem:[%s165] sm:$0xff]
        %v198 = vld [vmem:[%s165 + $0x8] sm:$0xff]
        %v199 = vpack.c.bf16 %v198, %v197
        %v200 = vld [vmem:[#allocation4] sm:$0xf]
        %v201 = vld [vmem:[#allocation4 + $0x4] sm:$0xf]
        %v202 = vld [vmem:[#allocation4 + $0x8] sm:$0xf]
        %v203 = vld [vmem:[#allocation4 + $0xc] sm:$0xf]
        %v208 = vunpack.c.l.b16 %v200
        %v209 = vunpack.c.l.b16 %v201
        %v210 = vunpack.c.l.b16 %v202
        %v211 = vunpack.c.l.b16 %v203
        %v212 = vpack.c.b16 %v209, %v208
        %v213 = vpack.c.b16 %v211, %v210
        %vm216 = vcmask 261120
        %v218 = vsel %vm216, %v199, 0
        %220 = vmatprep.subr.bf16.mxu0 0
        %221 = vmatpush1.bf16.msra.mxu0 %v212
        %222 = vmatprep.subr.bf16.mxu0 0
        %223 = vmatpush1.bf16.msra.mxu0 %v213
        %224 = vmatprep.subr.bf16.mxu0 0
        %225 = vmatpush1.bf16.msra.mxu0 0
        %226 = vmatprep.subr.bf16.mxu0 0
        %227 = vmatpush1.bf16.msra.mxu0 0
        %228 = vmatprep.subr.bf16.mxu0 0
        %229 = vmatpush1.bf16.msra.mxu0 0
        %230 = vmatprep.subr.bf16.mxu0 0
        %231 = vmatpush1.bf16.msra.mxu0 0
        %232 = vmatprep.subr.bf16.mxu0 0
        %233 = vmatpush1.bf16.msra.mxu0 0
        %234 = vmatprep.subr.bf16.mxu0 0
        %235 = vmatpush1.bf16.msra.mxu0 0
        %236 = vmatprep.subr.bf16.mxu0 0
        %237 = vmatpush1.bf16.msra.mxu0 0
        %238 = vmatprep.subr.bf16.mxu0 0
        %239 = vmatpush1.bf16.msra.mxu0 0
        %240 = vmatprep.subr.bf16.mxu0 0
        %241 = vmatpush1.bf16.msra.mxu0 0
        %242 = vmatprep.subr.bf16.mxu0 0
        %243 = vmatpush1.bf16.msra.mxu0 0
        %244 = vmatprep.subr.bf16.mxu0 0
        %245 = vmatpush1.bf16.msra.mxu0 0
        %246 = vmatprep.subr.bf16.mxu0 0
        %247 = vmatpush1.bf16.msra.mxu0 0
        %248 = vmatprep.subr.bf16.mxu0 0
        %249 = vmatpush1.bf16.msra.mxu0 0
        %250 = vmatprep.subr.bf16.mxu0 0
        %251 = vmatpush1.bf16.msra.mxu0 0
        %252 = vmatprep.mubr.bf16.mxu0 0
        %253 = vmatmul.mubr.bf16.gmra.mrb[0].mxu0 %v218
        %v254 = vpop.f32.mrb[0].mxu0
        %v255 = vadd.f32 0.0, %v254
        %v256 = vpop.f32.mrb[0].mxu0
        %v257 = vpop.f32.mrb[0].mxu0
        %v258 = vadd.f32 0.0, %v257
        %v259 = vpop.f32.mrb[0].mxu0
        %260 = vdwg.mxu0
        %v261 = vmax.f32 %v255, 0.0
        %v262 = vmax.f32 %v258, 0.0
        %263 = vxpose.xlu0.b32.start [1/16] %v261, 128
        %264 = vxpose.xlu0.b32.cont [2/16] %v262, 128
        %265 = vxpose.xlu0.b32.cont [3/16] 0.0, 128
        %266 = vxpose.xlu0.b32.cont [4/16] 0.0, 128
        %267 = vxpose.xlu0.b32.cont [5/16] 0.0, 128
        %268 = vxpose.xlu0.b32.cont [6/16] 0.0, 128
        %269 = vxpose.xlu0.b32.cont [7/16] 0.0, 128
        %270 = vxpose.xlu0.b32.cont [8/16] 0.0, 128
        %271 = vxpose.xlu0.b32.cont [9/16] 0.0, 128
        %272 = vxpose.xlu0.b32.cont [10/16] 0.0, 128
        %273 = vxpose.xlu0.b32.cont [11/16] 0.0, 128
        %274 = vxpose.xlu0.b32.cont [12/16] 0.0, 128
        %275 = vxpose.xlu0.b32.cont [13/16] 0.0, 128
        %276 = vxpose.xlu0.b32.cont [14/16] 0.0, 128
        %277 = vxpose.xlu0.b32.cont [15/16] 0.0, 128
        %278 = vxpose.xlu0.b32.end [16/16] 0.0, 128
        %v279 = vpop.trf.xlu0
        %v280 = vpop.trf.xlu0
        %v281 = vpop.trf.xlu0
        %v282 = vpop.trf.xlu0
        %v283 = vpop.trf.xlu0
        %v284 = vpop.trf.xlu0
        %v285 = vpop.trf.xlu0
        %v286 = vpop.trf.xlu0
        %v287 = vpop.trf.xlu0
        %v288 = vpop.trf.xlu0
        %v289 = vpop.trf.xlu0
        %v290 = vpop.trf.xlu0
        %v291 = vpop.trf.xlu0
        %v292 = vpop.trf.xlu0
        %v293 = vpop.trf.xlu0
        %v294 = vpop.trf.xlu0
        %297 = vrot.lane.b32.xlu0 %v261, 96
        %v298 = vpop.permute.xlu0 %297
        %299 = vrot.lane.b32.xlu0 %v262, 96
        %v300 = vpop.permute.xlu0 %299
        %vm303 = vcmask 64512
        %v304 = vsel %vm303, %v298, 1.0
        %v305 = vsel %vm303, %v300, 1.0
        %vm306 = vcmask 130048
        %v308 = vsel %vm306, %v279, 0
        %310 = vmatprep.subr.mxu0 0.0
        %v311 = vand.u32 %v304, 4294901760
        %312 = vmatpush1.msra.mxu0 %v311
        %313 = vmatprep.subr.mxu0 0.0
        %v314 = vand.u32 %v305, 4294901760
        %315 = vmatpush1.msra.mxu0 %v314
        %316 = vmatprep.subr.mxu0 0.0
        %317 = vmatpush1.msra.mxu0 0.0
        %318 = vmatprep.subr.mxu0 0.0
        %319 = vmatpush1.msra.mxu0 0.0
        %320 = vmatprep.subr.mxu0 0.0
        %321 = vmatpush1.msra.mxu0 0.0
        %322 = vmatprep.subr.mxu0 0.0
        %323 = vmatpush1.msra.mxu0 0.0
        %324 = vmatprep.subr.mxu0 0.0
        %325 = vmatpush1.msra.mxu0 0.0
        %326 = vmatprep.subr.mxu0 0.0
        %327 = vmatpush1.msra.mxu0 0.0
        %328 = vmatprep.subr.mxu0 0.0
        %329 = vmatpush1.msra.mxu0 0.0
        %330 = vmatprep.subr.mxu0 0.0
        %331 = vmatpush1.msra.mxu0 0.0
        %332 = vmatprep.subr.mxu0 0.0
        %333 = vmatpush1.msra.mxu0 0.0
        %334 = vmatprep.subr.mxu0 0.0
        %335 = vmatpush1.msra.mxu0 0.0
        %336 = vmatprep.subr.mxu0 0.0
        %337 = vmatpush1.msra.mxu0 0.0
        %338 = vmatprep.subr.mxu0 0.0
        %339 = vmatpush1.msra.mxu0 0.0
        %340 = vmatprep.subr.mxu0 0.0
        %341 = vmatpush1.msra.mxu0 0.0
        %342 = vmatprep.subr.mxu0 0.0
        %343 = vmatpush1.msra.mxu0 0.0
        %344 = vmatprep.subr.mxu0 0.0
        %345 = vmatpush1.msra.mxu0 0.0
        %346 = vmatprep.subr.mxu0 0.0
        %347 = vmatpush1.msra.mxu0 0.0
        %348 = vmatprep.subr.mxu0 0.0
        %349 = vmatpush1.msra.mxu0 0.0
        %350 = vmatprep.subr.mxu0 0.0
        %351 = vmatpush1.msra.mxu0 0.0
        %352 = vmatprep.subr.mxu0 0.0
        %353 = vmatpush1.msra.mxu0 0.0
        %354 = vmatprep.subr.mxu0 0.0
        %355 = vmatpush1.msra.mxu0 0.0
        %356 = vmatprep.subr.mxu0 0.0
        %357 = vmatpush1.msra.mxu0 0.0
        %358 = vmatprep.subr.mxu0 0.0
        %359 = vmatpush1.msra.mxu0 0.0
        %360 = vmatprep.subr.mxu0 0.0
        %361 = vmatpush1.msra.mxu0 0.0
        %362 = vmatprep.subr.mxu0 0.0
        %363 = vmatpush1.msra.mxu0 0.0
        %364 = vmatprep.subr.mxu0 0.0
        %365 = vmatpush1.msra.mxu0 0.0
        %366 = vmatprep.subr.mxu0 0.0
        %367 = vmatpush1.msra.mxu0 0.0
        %368 = vmatprep.subr.mxu0 0.0
        %369 = vmatpush1.msra.mxu0 0.0
        %370 = vmatprep.subr.mxu0 0.0
        %371 = vmatpush1.msra.mxu0 0.0
        %372 = vmatprep.subr.mxu0 0.0
        %373 = vmatpush1.msra.mxu0 0.0
        %374 = vmatprep.subr.mxu0 0.0
        %375 = vmatpush1.msra.mxu0 0.0
        %376 = vmatprep.mubr.f32.mxu0 0.0
        %v377 = vand.u32 %v308, 4294901760
        %v378 = vsub.f32 %v308, %v377
        %v379 = vand.u32 %v378, 4294901760
        %v380 = vsub.f32 %v378, %v379
        %v381 = vand.u32 %v380, 4294901760
        %382 = vmatmul.mubr.f32.gmra.mrb[0].mxu0 %v381
        %v383 = vpop.f32.mrb[0].mxu0
        %v384 = vadd.f32 0.0, %v383
        %v385 = vpop.f32.mrb[0].mxu0
        %386 = vdwg.mxu0
        %387 = vmatprep.subr.mxu0 0.0
        %v388 = vand.u32 %v304, 4294901760
        %v389 = vsub.f32 %v304, %v388
        %v390 = vand.u32 %v389, 4294901760
        %v391 = vsub.f32 %v389, %v390
        %v392 = vand.u32 %v391, 4294901760
        %393 = vmatpush1.msra.mxu0 %v392
        %394 = vmatprep.subr.mxu0 0.0
        %v395 = vand.u32 %v305, 4294901760
        %v396 = vsub.f32 %v305, %v395
        %v397 = vand.u32 %v396, 4294901760
        %v398 = vsub.f32 %v396, %v397
        %v399 = vand.u32 %v398, 4294901760
        %400 = vmatpush1.msra.mxu0 %v399
        %401 = vmatprep.subr.mxu0 0.0
        %402 = vmatpush1.msra.mxu0 0.0
        %403 = vmatprep.subr.mxu0 0.0
        %404 = vmatpush1.msra.mxu0 0.0
        %405 = vmatprep.subr.mxu0 0.0
        %406 = vmatpush1.msra.mxu0 0.0
        %407 = vmatprep.subr.mxu0 0.0
        %408 = vmatpush1.msra.mxu0 0.0
        %409 = vmatprep.subr.mxu0 0.0
        %410 = vmatpush1.msra.mxu0 0.0
        %411 = vmatprep.subr.mxu0 0.0
        %412 = vmatpush1.msra.mxu0 0.0
        %413 = vmatprep.subr.mxu0 0.0
        %414 = vmatpush1.msra.mxu0 0.0
        %415 = vmatprep.subr.mxu0 0.0
        %416 = vmatpush1.msra.mxu0 0.0
        %417 = vmatprep.subr.mxu0 0.0
        %418 = vmatpush1.msra.mxu0 0.0
        %419 = vmatprep.subr.mxu0 0.0
        %420 = vmatpush1.msra.mxu0 0.0
        %421 = vmatprep.subr.mxu0 0.0
        %422 = vmatpush1.msra.mxu0 0.0
        %423 = vmatprep.subr.mxu0 0.0
        %424 = vmatpush1.msra.mxu0 0.0
        %425 = vmatprep.subr.mxu0 0.0
        %426 = vmatpush1.msra.mxu0 0.0
        %427 = vmatprep.subr.mxu0 0.0
        %428 = vmatpush1.msra.mxu0 0.0
        %429 = vmatprep.subr.mxu0 0.0
        %430 = vmatpush1.msra.mxu0 0.0
        %431 = vmatprep.subr.mxu0 0.0
        %432 = vmatpush1.msra.mxu0 0.0
        %433 = vmatprep.subr.mxu0 0.0
        %434 = vmatpush1.msra.mxu0 0.0
        %435 = vmatprep.subr.mxu0 0.0
        %436 = vmatpush1.msra.mxu0 0.0
        %437 = vmatprep.subr.mxu0 0.0
        %438 = vmatpush1.msra.mxu0 0.0
        %439 = vmatprep.subr.mxu0 0.0
        %440 = vmatpush1.msra.mxu0 0.0
        %441 = vmatprep.subr.mxu0 0.0
        %442 = vmatpush1.msra.mxu0 0.0
        %443 = vmatprep.subr.mxu0 0.0
        %444 = vmatpush1.msra.mxu0 0.0
        %445 = vmatprep.subr.mxu0 0.0
        %446 = vmatpush1.msra.mxu0 0.0
        %447 = vmatprep.subr.mxu0 0.0
        %448 = vmatpush1.msra.mxu0 0.0
        %449 = vmatprep.subr.mxu0 0.0
        %450 = vmatpush1.msra.mxu0 0.0
        %451 = vmatprep.subr.mxu0 0.0
        %452 = vmatpush1.msra.mxu0 0.0
        %453 = vmatprep.subr.mxu0 0.0
        %454 = vmatpush1.msra.mxu0 0.0
        %455 = vmatprep.subr.mxu0 0.0
        %456 = vmatpush1.msra.mxu0 0.0
        %457 = vmatprep.subr.mxu0 0.0
        %458 = vmatpush1.msra.mxu0 0.0
        %459 = vmatprep.subr.mxu0 0.0
        %460 = vmatpush1.msra.mxu0 0.0
        %461 = vmatprep.mubr.f32.mxu0 0.0
        %v462 = vand.u32 %v308, 4294901760
        %463 = vmatmul.mubr.f32.gmra.mrb[0].mxu0 %v462
        %v464 = vpop.f32.mrb[0].mxu0
        %v465 = vadd.f32 %v384, %v464
        %v466 = vpop.f32.mrb[0].mxu0
        %467 = vdwg.mxu0
        %468 = vmatprep.subr.mxu0 0.0
        %v469 = vand.u32 %v304, 4294901760
        %v470 = vsub.f32 %v304, %v469
        %471 = vmatpush1.msra.mxu0 %v470
        %472 = vmatprep.subr.mxu0 0.0
        %v473 = vand.u32 %v305, 4294901760
        %v474 = vsub.f32 %v305, %v473
        %475 = vmatpush1.msra.mxu0 %v474
        %476 = vmatprep.subr.mxu0 0.0
        %477 = vmatpush1.msra.mxu0 0.0
        %478 = vmatprep.subr.mxu0 0.0
        %479 = vmatpush1.msra.mxu0 0.0
        %480 = vmatprep.subr.mxu0 0.0
        %481 = vmatpush1.msra.mxu0 0.0
        %482 = vmatprep.subr.mxu0 0.0
        %483 = vmatpush1.msra.mxu0 0.0
        %484 = vmatprep.subr.mxu0 0.0
        %485 = vmatpush1.msra.mxu0 0.0
        %486 = vmatprep.subr.mxu0 0.0
        %487 = vmatpush1.msra.mxu0 0.0
        %488 = vmatprep.subr.mxu0 0.0
        %489 = vmatpush1.msra.mxu0 0.0
        %490 = vmatprep.subr.mxu0 0.0
        %491 = vmatpush1.msra.mxu0 0.0
        %492 = vmatprep.subr.mxu0 0.0
        %493 = vmatpush1.msra.mxu0 0.0
        %494 = vmatprep.subr.mxu0 0.0
        %495 = vmatpush1.msra.mxu0 0.0
        %496 = vmatprep.subr.mxu0 0.0
        %497 = vmatpush1.msra.mxu0 0.0
        %498 = vmatprep.subr.mxu0 0.0
        %499 = vmatpush1.msra.mxu0 0.0
        %500 = vmatprep.subr.mxu0 0.0
        %501 = vmatpush1.msra.mxu0 0.0
        %502 = vmatprep.subr.mxu0 0.0
        %503 = vmatpush1.msra.mxu0 0.0
        %504 = vmatprep.subr.mxu0 0.0
        %505 = vmatpush1.msra.mxu0 0.0
        %506 = vmatprep.subr.mxu0 0.0
        %507 = vmatpush1.msra.mxu0 0.0
        %508 = vmatprep.subr.mxu0 0.0
        %509 = vmatpush1.msra.mxu0 0.0
        %510 = vmatprep.subr.mxu0 0.0
        %511 = vmatpush1.msra.mxu0 0.0
        %512 = vmatprep.subr.mxu0 0.0
        %513 = vmatpush1.msra.mxu0 0.0
        %514 = vmatprep.subr.mxu0 0.0
        %515 = vmatpush1.msra.mxu0 0.0
        %516 = vmatprep.subr.mxu0 0.0
        %517 = vmatpush1.msra.mxu0 0.0
        %518 = vmatprep.subr.mxu0 0.0
        %519 = vmatpush1.msra.mxu0 0.0
        %520 = vmatprep.subr.mxu0 0.0
        %521 = vmatpush1.msra.mxu0 0.0
        %522 = vmatprep.subr.mxu0 0.0
        %523 = vmatpush1.msra.mxu0 0.0
        %524 = vmatprep.subr.mxu0 0.0
        %525 = vmatpush1.msra.mxu0 0.0
        %526 = vmatprep.subr.mxu0 0.0
        %527 = vmatpush1.msra.mxu0 0.0
        %528 = vmatprep.subr.mxu0 0.0
        %529 = vmatpush1.msra.mxu0 0.0
        %530 = vmatprep.subr.mxu0 0.0
        %531 = vmatpush1.msra.mxu0 0.0
        %532 = vmatprep.subr.mxu0 0.0
        %533 = vmatpush1.msra.mxu0 0.0
        %534 = vmatprep.subr.mxu0 0.0
        %535 = vmatpush1.msra.mxu0 0.0
        %536 = vmatprep.mubr.f32.mxu0 0.0
        %v537 = vand.u32 %v308, 4294901760
        %v538 = vsub.f32 %v308, %v537
        %539 = vmatmul.mubr.f32.gmra.mrb[0].mxu0 %v538
        %v540 = vpop.f32.mrb[0].mxu0
        %v541 = vadd.f32 %v465, %v540
        %v542 = vpop.f32.mrb[0].mxu0
        %543 = vdwg.mxu0
        %544 = vmatprep.subr.mxu0 0.0
        %v545 = vand.u32 %v304, 4294901760
        %546 = vmatpush1.msra.mxu0 %v545
        %547 = vmatprep.subr.mxu0 0.0
        %v548 = vand.u32 %v305, 4294901760
        %549 = vmatpush1.msra.mxu0 %v548
        %550 = vmatprep.subr.mxu0 0.0
        %551 = vmatpush1.msra.mxu0 0.0
        %552 = vmatprep.subr.mxu0 0.0
        %553 = vmatpush1.msra.mxu0 0.0
        %554 = vmatprep.subr.mxu0 0.0
        %555 = vmatpush1.msra.mxu0 0.0
        %556 = vmatprep.subr.mxu0 0.0
        %557 = vmatpush1.msra.mxu0 0.0
        %558 = vmatprep.subr.mxu0 0.0
        %559 = vmatpush1.msra.mxu0 0.0
        %560 = vmatprep.subr.mxu0 0.0
        %561 = vmatpush1.msra.mxu0 0.0
        %562 = vmatprep.subr.mxu0 0.0
        %563 = vmatpush1.msra.mxu0 0.0
        %564 = vmatprep.subr.mxu0 0.0
        %565 = vmatpush1.msra.mxu0 0.0
        %566 = vmatprep.subr.mxu0 0.0
        %567 = vmatpush1.msra.mxu0 0.0
        %568 = vmatprep.subr.mxu0 0.0
        %569 = vmatpush1.msra.mxu0 0.0
        %570 = vmatprep.subr.mxu0 0.0
        %571 = vmatpush1.msra.mxu0 0.0
        %572 = vmatprep.subr.mxu0 0.0
        %573 = vmatpush1.msra.mxu0 0.0
        %574 = vmatprep.subr.mxu0 0.0
        %575 = vmatpush1.msra.mxu0 0.0
        %576 = vmatprep.subr.mxu0 0.0
        %577 = vmatpush1.msra.mxu0 0.0
        %578 = vmatprep.subr.mxu0 0.0
        %579 = vmatpush1.msra.mxu0 0.0
        %580 = vmatprep.subr.mxu0 0.0
        %581 = vmatpush1.msra.mxu0 0.0
        %582 = vmatprep.subr.mxu0 0.0
        %583 = vmatpush1.msra.mxu0 0.0
        %584 = vmatprep.subr.mxu0 0.0
        %585 = vmatpush1.msra.mxu0 0.0
        %586 = vmatprep.subr.mxu0 0.0
        %587 = vmatpush1.msra.mxu0 0.0
        %588 = vmatprep.subr.mxu0 0.0
        %589 = vmatpush1.msra.mxu0 0.0
        %590 = vmatprep.subr.mxu0 0.0
        %591 = vmatpush1.msra.mxu0 0.0
        %592 = vmatprep.subr.mxu0 0.0
        %593 = vmatpush1.msra.mxu0 0.0
        %594 = vmatprep.subr.mxu0 0.0
        %595 = vmatpush1.msra.mxu0 0.0
        %596 = vmatprep.subr.mxu0 0.0
        %597 = vmatpush1.msra.mxu0 0.0
        %598 = vmatprep.subr.mxu0 0.0
        %599 = vmatpush1.msra.mxu0 0.0
        %600 = vmatprep.subr.mxu0 0.0
        %601 = vmatpush1.msra.mxu0 0.0
        %602 = vmatprep.subr.mxu0 0.0
        %603 = vmatpush1.msra.mxu0 0.0
        %604 = vmatprep.subr.mxu0 0.0
        %605 = vmatpush1.msra.mxu0 0.0
        %606 = vmatprep.subr.mxu0 0.0
        %607 = vmatpush1.msra.mxu0 0.0
        %608 = vmatprep.subr.mxu0 0.0
        %609 = vmatpush1.msra.mxu0 0.0
        %610 = vmatprep.mubr.f32.mxu0 0.0
        %v611 = vand.u32 %v308, 4294901760
        %v612 = vsub.f32 %v308, %v611
        %v613 = vand.u32 %v612, 4294901760
        %614 = vmatmul.mubr.f32.gmra.mrb[0].mxu0 %v613
        %v615 = vpop.f32.mrb[0].mxu0
        %v616 = vadd.f32 %v541, %v615
        %v617 = vpop.f32.mrb[0].mxu0
        %618 = vdwg.mxu0
        %619 = vmatprep.subr.mxu0 0.0
        %v620 = vand.u32 %v304, 4294901760
        %v621 = vsub.f32 %v304, %v620
        %v622 = vand.u32 %v621, 4294901760
        %623 = vmatpush1.msra.mxu0 %v622
        %624 = vmatprep.subr.mxu0 0.0
        %v625 = vand.u32 %v305, 4294901760
        %v626 = vsub.f32 %v305, %v625
        %v627 = vand.u32 %v626, 4294901760
        %628 = vmatpush1.msra.mxu0 %v627
        %629 = vmatprep.subr.mxu0 0.0
        %630 = vmatpush1.msra.mxu0 0.0
        %631 = vmatprep.subr.mxu0 0.0
        %632 = vmatpush1.msra.mxu0 0.0
        %633 = vmatprep.subr.mxu0 0.0
        %634 = vmatpush1.msra.mxu0 0.0
        %635 = vmatprep.subr.mxu0 0.0
        %636 = vmatpush1.msra.mxu0 0.0
        %637 = vmatprep.subr.mxu0 0.0
        %638 = vmatpush1.msra.mxu0 0.0
        %639 = vmatprep.subr.mxu0 0.0
        %640 = vmatpush1.msra.mxu0 0.0
        %641 = vmatprep.subr.mxu0 0.0
        %642 = vmatpush1.msra.mxu0 0.0
        %643 = vmatprep.subr.mxu0 0.0
        %644 = vmatpush1.msra.mxu0 0.0
        %645 = vmatprep.subr.mxu0 0.0
        %646 = vmatpush1.msra.mxu0 0.0
        %647 = vmatprep.subr.mxu0 0.0
        %648 = vmatpush1.msra.mxu0 0.0
        %649 = vmatprep.subr.mxu0 0.0
        %650 = vmatpush1.msra.mxu0 0.0
        %651 = vmatprep.subr.mxu0 0.0
        %652 = vmatpush1.msra.mxu0 0.0
        %653 = vmatprep.subr.mxu0 0.0
        %654 = vmatpush1.msra.mxu0 0.0
        %655 = vmatprep.subr.mxu0 0.0
        %656 = vmatpush1.msra.mxu0 0.0
        %657 = vmatprep.subr.mxu0 0.0
        %658 = vmatpush1.msra.mxu0 0.0
        %659 = vmatprep.subr.mxu0 0.0
        %660 = vmatpush1.msra.mxu0 0.0
        %661 = vmatprep.subr.mxu0 0.0
        %662 = vmatpush1.msra.mxu0 0.0
        %663 = vmatprep.subr.mxu0 0.0
        %664 = vmatpush1.msra.mxu0 0.0
        %665 = vmatprep.subr.mxu0 0.0
        %666 = vmatpush1.msra.mxu0 0.0
        %667 = vmatprep.subr.mxu0 0.0
        %668 = vmatpush1.msra.mxu0 0.0
        %669 = vmatprep.subr.mxu0 0.0
        %670 = vmatpush1.msra.mxu0 0.0
        %671 = vmatprep.subr.mxu0 0.0
        %672 = vmatpush1.msra.mxu0 0.0
        %673 = vmatprep.subr.mxu0 0.0
        %674 = vmatpush1.msra.mxu0 0.0
        %675 = vmatprep.subr.mxu0 0.0
        %676 = vmatpush1.msra.mxu0 0.0
        %677 = vmatprep.subr.mxu0 0.0
        %678 = vmatpush1.msra.mxu0 0.0
        %679 = vmatprep.subr.mxu0 0.0
        %680 = vmatpush1.msra.mxu0 0.0
        %681 = vmatprep.subr.mxu0 0.0
        %682 = vmatpush1.msra.mxu0 0.0
        %683 = vmatprep.subr.mxu0 0.0
        %684 = vmatpush1.msra.mxu0 0.0
        %685 = vmatprep.subr.mxu0 0.0
        %686 = vmatpush1.msra.mxu0 0.0
        %687 = vmatprep.subr.mxu0 0.0
        %688 = vmatpush1.msra.mxu0 0.0
        %689 = vmatprep.mubr.f32.mxu0 0.0
        %v690 = vand.u32 %v308, 4294901760
        %691 = vmatmul.mubr.f32.gmra.mrb[0].mxu0 %v690
        %v692 = vpop.f32.mrb[0].mxu0
        %v693 = vadd.f32 %v616, %v692
        %v694 = vpop.f32.mrb[0].mxu0
        %695 = vdwg.mxu0
        %696 = vmatprep.subr.mxu0 0.0
        %v697 = vand.u32 %v304, 4294901760
        %698 = vmatpush1.msra.mxu0 %v697
        %699 = vmatprep.subr.mxu0 0.0
        %v700 = vand.u32 %v305, 4294901760
        %701 = vmatpush1.msra.mxu0 %v700
        %702 = vmatprep.subr.mxu0 0.0
        %703 = vmatpush1.msra.mxu0 0.0
        %704 = vmatprep.subr.mxu0 0.0
        %705 = vmatpush1.msra.mxu0 0.0
        %706 = vmatprep.subr.mxu0 0.0
        %707 = vmatpush1.msra.mxu0 0.0
        %708 = vmatprep.subr.mxu0 0.0
        %709 = vmatpush1.msra.mxu0 0.0
        %710 = vmatprep.subr.mxu0 0.0
        %711 = vmatpush1.msra.mxu0 0.0
        %712 = vmatprep.subr.mxu0 0.0
        %713 = vmatpush1.msra.mxu0 0.0
        %714 = vmatprep.subr.mxu0 0.0
        %715 = vmatpush1.msra.mxu0 0.0
        %716 = vmatprep.subr.mxu0 0.0
        %717 = vmatpush1.msra.mxu0 0.0
        %718 = vmatprep.subr.mxu0 0.0
        %719 = vmatpush1.msra.mxu0 0.0
        %720 = vmatprep.subr.mxu0 0.0
        %721 = vmatpush1.msra.mxu0 0.0
        %722 = vmatprep.subr.mxu0 0.0
        %723 = vmatpush1.msra.mxu0 0.0
        %724 = vmatprep.subr.mxu0 0.0
        %725 = vmatpush1.msra.mxu0 0.0
        %726 = vmatprep.subr.mxu0 0.0
        %727 = vmatpush1.msra.mxu0 0.0
        %728 = vmatprep.subr.mxu0 0.0
        %729 = vmatpush1.msra.mxu0 0.0
        %730 = vmatprep.subr.mxu0 0.0
        %731 = vmatpush1.msra.mxu0 0.0
        %732 = vmatprep.subr.mxu0 0.0
        %733 = vmatpush1.msra.mxu0 0.0
        %734 = vmatprep.subr.mxu0 0.0
        %735 = vmatpush1.msra.mxu0 0.0
        %736 = vmatprep.subr.mxu0 0.0
        %737 = vmatpush1.msra.mxu0 0.0
        %738 = vmatprep.subr.mxu0 0.0
        %739 = vmatpush1.msra.mxu0 0.0
        %740 = vmatprep.subr.mxu0 0.0
        %741 = vmatpush1.msra.mxu0 0.0
        %742 = vmatprep.subr.mxu0 0.0
        %743 = vmatpush1.msra.mxu0 0.0
        %744 = vmatprep.subr.mxu0 0.0
        %745 = vmatpush1.msra.mxu0 0.0
        %746 = vmatprep.subr.mxu0 0.0
        %747 = vmatpush1.msra.mxu0 0.0
        %748 = vmatprep.subr.mxu0 0.0
        %749 = vmatpush1.msra.mxu0 0.0
        %750 = vmatprep.subr.mxu0 0.0
        %751 = vmatpush1.msra.mxu0 0.0
        %752 = vmatprep.subr.mxu0 0.0
        %753 = vmatpush1.msra.mxu0 0.0
        %754 = vmatprep.subr.mxu0 0.0
        %755 = vmatpush1.msra.mxu0 0.0
        %756 = vmatprep.subr.mxu0 0.0
        %757 = vmatpush1.msra.mxu0 0.0
        %758 = vmatprep.subr.mxu0 0.0
        %759 = vmatpush1.msra.mxu0 0.0
        %760 = vmatprep.subr.mxu0 0.0
        %761 = vmatpush1.msra.mxu0 0.0
        %762 = vmatprep.mubr.f32.mxu0 0.0
        %v763 = vand.u32 %v308, 4294901760
        %764 = vmatmul.mubr.f32.gmra.mrb[0].mxu0 %v763
        %v765 = vpop.f32.mrb[0].mxu0
        %v766 = vadd.f32 %v693, %v765
        %v767 = vpop.f32.mrb[0].mxu0
        %768 = vdwg.mxu0
        %769 = vrot.lane.b32.xlu0 %v261, 88
        %v770 = vpop.permute.xlu0 %769
        %771 = vrot.lane.b32.xlu0 %v262, 88
        %v772 = vpop.permute.xlu0 %771
        %v775 = vsel %vm303, %v770, 1.0
        %v776 = vsel %vm303, %v772, 1.0
        %v778 = vsel %vm306, %v280, 0
        %780 = vmatprep.subr.mxu0 0.0
        %v781 = vand.u32 %v775, 4294901760
        %782 = vmatpush1.msra.mxu0 %v781
        %783 = vmatprep.subr.mxu0 0.0
        %v784 = vand.u32 %v776, 4294901760
        %785 = vmatpush1.msra.mxu0 %v784
        %786 = vmatprep.subr.mxu0 0.0
        %787 = vmatpush1.msra.mxu0 0.0
        %788 = vmatprep.subr.mxu0 0.0
        %789 = vmatpush1.msra.mxu0 0.0
        %790 = vmatprep.subr.mxu0 0.0
        %791 = vmatpush1.msra.mxu0 0.0
        %792 = vmatprep.subr.mxu0 0.0
        %793 = vmatpush1.msra.mxu0 0.0
        %794 = vmatprep.subr.mxu0 0.0
        %795 = vmatpush1.msra.mxu0 0.0
        %796 = vmatprep.subr.mxu0 0.0
        %797 = vmatpush1.msra.mxu0 0.0
        %798 = vmatprep.subr.mxu0 0.0
        %799 = vmatpush1.msra.mxu0 0.0
        %800 = vmatprep.subr.mxu0 0.0
        %801 = vmatpush1.msra.mxu0 0.0
        %802 = vmatprep.subr.mxu0 0.0
        %803 = vmatpush1.msra.mxu0 0.0
        %804 = vmatprep.subr.mxu0 0.0
        %805 = vmatpush1.msra.mxu0 0.0
        %806 = vmatprep.subr.mxu0 0.0
        %807 = vmatpush1.msra.mxu0 0.0
        %808 = vmatprep.subr.mxu0 0.0
        %809 = vmatpush1.msra.mxu0 0.0
        %810 = vmatprep.subr.mxu0 0.0
        %811 = vmatpush1.msra.mxu0 0.0
        %812 = vmatprep.subr.mxu0 0.0
        %813 = vmatpush1.msra.mxu0 0.0
        %814 = vmatprep.subr.mxu0 0.0
        %815 = vmatpush1.msra.mxu0 0.0
        %816 = vmatprep.subr.mxu0 0.0
        %817 = vmatpush1.msra.mxu0 0.0
        %818 = vmatprep.subr.mxu0 0.0
        %819 = vmatpush1.msra.mxu0 0.0
        %820 = vmatprep.subr.mxu0 0.0
        %821 = vmatpush1.msra.mxu0 0.0
        %822 = vmatprep.subr.mxu0 0.0
        %823 = vmatpush1.msra.mxu0 0.0
        %824 = vmatprep.subr.mxu0 0.0
        %825 = vmatpush1.msra.mxu0 0.0
        %826 = vmatprep.subr.mxu0 0.0
        %827 = vmatpush1.msra.mxu0 0.0
        %828 = vmatprep.subr.mxu0 0.0
        %829 = vmatpush1.msra.mxu0 0.0
        %830 = vmatprep.subr.mxu0 0.0
        %831 = vmatpush1.msra.mxu0 0.0
        %832 = vmatprep.subr.mxu0 0.0
        %833 = vmatpush1.msra.mxu0 0.0
        %834 = vmatprep.subr.mxu0 0.0
        %835 = vmatpush1.msra.mxu0 0.0
        %836 = vmatprep.subr.mxu0 0.0
        %837 = vmatpush1.msra.mxu0 0.0
        %838 = vmatprep.subr.mxu0 0.0
        %839 = vmatpush1.msra.mxu0 0.0
        %840 = vmatprep.subr.mxu0 0.0
        %841 = vmatpush1.msra.mxu0 0.0
        %842 = vmatprep.subr.mxu0 0.0
        %843 = vmatpush1.msra.mxu0 0.0
        %844 = vmatprep.subr.mxu0 0.0
        %845 = vmatpush1.msra.mxu0 0.0
        %846 = vmatprep.mubr.f32.mxu0 0.0
        %v847 = vand.u32 %v778, 4294901760
        %v848 = vsub.f32 %v778, %v847
        %v849 = vand.u32 %v848, 4294901760
        %v850 = vsub.f32 %v848, %v849
        %v851 = vand.u32 %v850, 4294901760
        %852 = vmatmul.mubr.f32.gmra.mrb[0].mxu0 %v851
        %v853 = vpop.f32.mrb[0].mxu0
        %v854 = vadd.f32 0.0, %v853
        %v855 = vpop.f32.mrb[0].mxu0
        %856 = vdwg.mxu0
        %857 = vmatprep.subr.mxu0 0.0
        %v858 = vand.u32 %v775, 4294901760
        %v859 = vsub.f32 %v775, %v858
        %v860 = vand.u32 %v859, 4294901760
        %v861 = vsub.f32 %v859, %v860
        %v862 = vand.u32 %v861, 4294901760
        %863 = vmatpush1.msra.mxu0 %v862
        %864 = vmatprep.subr.mxu0 0.0
        %v865 = vand.u32 %v776, 4294901760
        %v866 = vsub.f32 %v776, %v865
        %v867 = vand.u32 %v866, 4294901760
        %v868 = vsub.f32 %v866, %v867
        %v869 = vand.u32 %v868, 4294901760
        %870 = vmatpush1.msra.mxu0 %v869
        %871 = vmatprep.subr.mxu0 0.0
        %872 = vmatpush1.msra.mxu0 0.0
        %873 = vmatprep.subr.mxu0 0.0
        %874 = vmatpush1.msra.mxu0 0.0
        %875 = vmatprep.subr.mxu0 0.0
        %876 = vmatpush1.msra.mxu0 0.0
        %877 = vmatprep.subr.mxu0 0.0
        %878 = vmatpush1.msra.mxu0 0.0
        %879 = vmatprep.subr.mxu0 0.0
        %880 = vmatpush1.msra.mxu0 0.0
        %881 = vmatprep.subr.mxu0 0.0
        %882 = vmatpush1.msra.mxu0 0.0
        %883 = vmatprep.subr.mxu0 0.0
        %884 = vmatpush1.msra.mxu0 0.0
        %885 = vmatprep.subr.mxu0 0.0
        %886 = vmatpush1.msra.mxu0 0.0
        %887 = vmatprep.subr.mxu0 0.0
        %888 = vmatpush1.msra.mxu0 0.0
        %889 = vmatprep.subr.mxu0 0.0
        %890 = vmatpush1.msra.mxu0 0.0
        %891 = vmatprep.subr.mxu0 0.0
        %892 = vmatpush1.msra.mxu0 0.0
        %893 = vmatprep.subr.mxu0 0.0
        %894 = vmatpush1.msra.mxu0 0.0
        %895 = vmatprep.subr.mxu0 0.0
        %896 = vmatpush1.msra.mxu0 0.0
        %897 = vmatprep.subr.mxu0 0.0
        %898 = vmatpush1.msra.mxu0 0.0
        %899 = vmatprep.subr.mxu0 0.0
        %900 = vmatpush1.msra.mxu0 0.0
        %901 = vmatprep.subr.mxu0 0.0
        %902 = vmatpush1.msra.mxu0 0.0
        %903 = vmatprep.subr.mxu0 0.0
        %904 = vmatpush1.msra.mxu0 0.0
        %905 = vmatprep.subr.mxu0 0.0
        %906 = vmatpush1.msra.mxu0 0.0
        %907 = vmatprep.subr.mxu0 0.0
        %908 = vmatpush1.msra.mxu0 0.0
        %909 = vmatprep.subr.mxu0 0.0
        %910 = vmatpush1.msra.mxu0 0.0
        %911 = vmatprep.subr.mxu0 0.0
        %912 = vmatpush1.msra.mxu0 0.0
        %913 = vmatprep.subr.mxu0 0.0
        %914 = vmatpush1.msra.mxu0 0.0
        %915 = vmatprep.subr.mxu0 0.0
        %916 = vmatpush1.msra.mxu0 0.0
        %917 = vmatprep.subr.mxu0 0.0
        %918 = vmatpush1.msra.mxu0 0.0
        %919 = vmatprep.subr.mxu0 0.0
        %920 = vmatpush1.msra.mxu0 0.0
        %921 = vmatprep.subr.mxu0 0.0
        %922 = vmatpush1.msra.mxu0 0.0
        %923 = vmatprep.subr.mxu0 0.0
        %924 = vmatpush1.msra.mxu0 0.0
        %925 = vmatprep.subr.mxu0 0.0
        %926 = vmatpush1.msra.mxu0 0.0
        %927 = vmatprep.subr.mxu0 0.0
        %928 = vmatpush1.msra.mxu0 0.0
        %929 = vmatprep.subr.mxu0 0.0
        %930 = vmatpush1.msra.mxu0 0.0
        %931 = vmatprep.mubr.f32.mxu0 0.0
        %v932 = vand.u32 %v778, 4294901760
        %933 = vmatmul.mubr.f32.gmra.mrb[0].mxu0 %v932
        %v934 = vpop.f32.mrb[0].mxu0
        %v935 = vadd.f32 %v854, %v934
        %v936 = vpop.f32.mrb[0].mxu0
        %937 = vdwg.mxu0
        %938 = vmatprep.subr.mxu0 0.0
        %v939 = vand.u32 %v775, 4294901760
        %v940 = vsub.f32 %v775, %v939
        %941 = vmatpush1.msra.mxu0 %v940
        %942 = vmatprep.subr.mxu0 0.0
        %v943 = vand.u32 %v776, 4294901760
        %v944 = vsub.f32 %v776, %v943
        %945 = vmatpush1.msra.mxu0 %v944
        %946 = vmatprep.subr.mxu0 0.0
        %947 = vmatpush1.msra.mxu0 0.0
        %948 = vmatprep.subr.mxu0 0.0
        %949 = vmatpush1.msra.mxu0 0.0
        %950 = vmatprep.subr.mxu0 0.0
        %951 = vmatpush1.msra.mxu0 0.0
        %952 = vmatprep.subr.mxu0 0.0
        %953 = vmatpush1.msra.mxu0 0.0
        %954 = vmatprep.subr.mxu0 0.0
        %955 = vmatpush1.msra.mxu0 0.0
        %956 = vmatprep.subr.mxu0 0.0
        %957 = vmatpush1.msra.mxu0 0.0
        %958 = vmatprep.subr.mxu0 0.0
        %959 = vmatpush1.msra.mxu0 0.0
        %960 = vmatprep.subr.mxu0 0.0
        %961 = vmatpush1.msra.mxu0 0.0
        %962 = vmatprep.subr.mxu0 0.0
        %963 = vmatpush1.msra.mxu0 0.0
        %964 = vmatprep.subr.mxu0 0.0
        %965 = vmatpush1.msra.mxu0 0.0
        %966 = vmatprep.subr.mxu0 0.0
        %967 = vmatpush1.msra.mxu0 0.0
        %968 = vmatprep.subr.mxu0 0.0
        %969 = vmatpush1.msra.mxu0 0.0
        %970 = vmatprep.subr.mxu0 0.0
        %971 = vmatpush1.msra.mxu0 0.0
        %972 = vmatprep.subr.mxu0 0.0
        %973 = vmatpush1.msra.mxu0 0.0
        %974 = vmatprep.subr.mxu0 0.0
        %975 = vmatpush1.msra.mxu0 0.0
        %976 = vmatprep.subr.mxu0 0.0
        %977 = vmatpush1.msra.mxu0 0.0
        %978 = vmatprep.subr.mxu0 0.0
        %979 = vmatpush1.msra.mxu0 0.0
        %980 = vmatprep.subr.mxu0 0.0
        %981 = vmatpush1.msra.mxu0 0.0
        %982 = vmatprep.subr.mxu0 0.0
        %983 = vmatpush1.msra.mxu0 0.0
        %984 = vmatprep.subr.mxu0 0.0
        %985 = vmatpush1.msra.mxu0 0.0
        %986 = vmatprep.subr.mxu0 0.0
        %987 = vmatpush1.msra.mxu0 0.0
        %988 = vmatprep.subr.mxu0 0.0
        %989 = vmatpush1.msra.mxu0 0.0
        %990 = vmatprep.subr.mxu0 0.0
        %991 = vmatpush1.msra.mxu0 0.0
        %992 = vmatprep.subr.mxu0 0.0
        %993 = vmatpush1.msra.mxu0 0.0
        %994 = vmatprep.subr.mxu0 0.0
        %995 = vmatpush1.msra.mxu0 0.0
        %996 = vmatprep.subr.mxu0 0.0
        %997 = vmatpush1.msra.mxu0 0.0
        %998 = vmatprep.subr.mxu0 0.0
        %999 = vmatpush1.msra.mxu0 0.0
        %1000 = vmatprep.subr.mxu0 0.0
        %1001 = vmatpush1.msra.mxu0 0.0
        %1002 = vmatprep.subr.mxu0 0.0
        %1003 = vmatpush1.msra.mxu0 0.0
        %1004 = vmatprep.subr.mxu0 0.0
        %1005 = vmatpush1.msra.mxu0 0.0
        %1006 = vmatprep.mubr.f32.mxu0 0.0
        %v1007 = vand.u32 %v778, 4294901760
        %v1008 = vsub.f32 %v778, %v1007
        %1009 = vmatmul.mubr.f32.gmra.mrb[0].mxu0 %v1008
        %v1010 = vpop.f32.mrb[0].mxu0
        %v1011 = vadd.f32 %v935, %v1010
        %v1012 = vpop.f32.mrb[0].mxu0
        %1013 = vdwg.mxu0
        %1014 = vmatprep.subr.mxu0 0.0
        %v1015 = vand.u32 %v775, 4294901760
        %1016 = vmatpush1.msra.mxu0 %v1015
        %1017 = vmatprep.subr.mxu0 0.0
        %v1018 = vand.u32 %v776, 4294901760
        %1019 = vmatpush1.msra.mxu0 %v1018
        %1020 = vmatprep.subr.mxu0 0.0
        %1021 = vmatpush1.msra.mxu0 0.0
        %1022 = vmatprep.subr.mxu0 0.0
        %1023 = vmatpush1.msra.mxu0 0.0
        %1024 = vmatprep.subr.mxu0 0.0
        %1025 = vmatpush1.msra.mxu0 0.0
        %1026 = vmatprep.subr.mxu0 0.0
        %1027 = vmatpush1.msra.mxu0 0.0
        %1028 = vmatprep.subr.mxu0 0.0
        %1029 = vmatpush1.msra.mxu0 0.0
        %1030 = vmatprep.subr.mxu0 0.0
        %1031 = vmatpush1.msra.mxu0 0.0
        %1032 = vmatprep.subr.mxu0 0.0
        %1033 = vmatpush1.msra.mxu0 0.0
        %1034 = vmatprep.subr.mxu0 0.0
        %1035 = vmatpush1.msra.mxu0 0.0
        %1036 = vmatprep.subr.mxu0 0.0
        %1037 = vmatpush1.msra.mxu0 0.0
        %1038 = vmatprep.subr.mxu0 0.0
        %1039 = vmatpush1.msra.mxu0 0.0
        %1040 = vmatprep.subr.mxu0 0.0
        %1041 = vmatpush1.msra.mxu0 0.0
        %1042 = vmatprep.subr.mxu0 0.0
        %1043 = vmatpush1.msra.mxu0 0.0
        %1044 = vmatprep.subr.mxu0 0.0
        %1045 = vmatpush1.msra.mxu0 0.0
        %1046 = vmatprep.subr.mxu0 0.0
        %1047 = vmatpush1.msra.mxu0 0.0
        %1048 = vmatprep.subr.mxu0 0.0
        %1049 = vmatpush1.msra.mxu0 0.0
        %1050 = vmatprep.subr.mxu0 0.0
        %1051 = vmatpush1.msra.mxu0 0.0
        %1052 = vmatprep.subr.mxu0 0.0
        %1053 = vmatpush1.msra.mxu0 0.0
        %1054 = vmatprep.subr.mxu0 0.0
        %1055 = vmatpush1.msra.mxu0 0.0
        %1056 = vmatprep.subr.mxu0 0.0
        %1057 = vmatpush1.msra.mxu0 0.0
        %1058 = vmatprep.subr.mxu0 0.0
        %1059 = vmatpush1.msra.mxu0 0.0
        %1060 = vmatprep.subr.mxu0 0.0
        %1061 = vmatpush1.msra.mxu0 0.0
        %1062 = vmatprep.subr.mxu0 0.0
        %1063 = vmatpush1.msra.mxu0 0.0
        %1064 = vmatprep.subr.mxu0 0.0
        %1065 = vmatpush1.msra.mxu0 0.0
        %1066 = vmatprep.subr.mxu0 0.0
        %1067 = vmatpush1.msra.mxu0 0.0
        %1068 = vmatprep.subr.mxu0 0.0
        %1069 = vmatpush1.msra.mxu0 0.0
        %1070 = vmatprep.subr.mxu0 0.0
        %1071 = vmatpush1.msra.mxu0 0.0
        %1072 = vmatprep.subr.mxu0 0.0
        %1073 = vmatpush1.msra.mxu0 0.0
        %1074 = vmatprep.subr.mxu0 0.0
        %1075 = vmatpush1.msra.mxu0 0.0
        %1076 = vmatprep.subr.mxu0 0.0
        %1077 = vmatpush1.msra.mxu0 0.0
        %1078 = vmatprep.subr.mxu0 0.0
        %1079 = vmatpush1.msra.mxu0 0.0
        %1080 = vmatprep.mubr.f32.mxu0 0.0
        %v1081 = vand.u32 %v778, 4294901760
        %v1082 = vsub.f32 %v778, %v1081
        %v1083 = vand.u32 %v1082, 4294901760
        %1084 = vmatmul.mubr.f32.gmra.mrb[0].mxu0 %v1083
        %v1085 = vpop.f32.mrb[0].mxu0
        %v1086 = vadd.f32 %v1011, %v1085
        %v1087 = vpop.f32.mrb[0].mxu0
        %1088 = vdwg.mxu0
        %1089 = vmatprep.subr.mxu0 0.0
        %v1090 = vand.u32 %v775, 4294901760
        %v1091 = vsub.f32 %v775, %v1090
        %v1092 = vand.u32 %v1091, 4294901760
        %1093 = vmatpush1.msra.mxu0 %v1092
        %1094 = vmatprep.subr.mxu0 0.0
        %v1095 = vand.u32 %v776, 4294901760
        %v1096 = vsub.f32 %v776, %v1095
        %v1097 = vand.u32 %v1096, 4294901760
        %1098 = vmatpush1.msra.mxu0 %v1097
        %1099 = vmatprep.subr.mxu0 0.0
        %1100 = vmatpush1.msra.mxu0 0.0
        %1101 = vmatprep.subr.mxu0 0.0
        %1102 = vmatpush1.msra.mxu0 0.0
        %1103 = vmatprep.subr.mxu0 0.0
        %1104 = vmatpush1.msra.mxu0 0.0
        %1105 = vmatprep.subr.mxu0 0.0
        %1106 = vmatpush1.msra.mxu0 0.0
        %1107 = vmatprep.subr.mxu0 0.0
        %1108 = vmatpush1.msra.mxu0 0.0
        %1109 = vmatprep.subr.mxu0 0.0
        %1110 = vmatpush1.msra.mxu0 0.0
        %1111 = vmatprep.subr.mxu0 0.0
        %1112 = vmatpush1.msra.mxu0 0.0
        %1113 = vmatprep.subr.mxu0 0.0
        %1114 = vmatpush1.msra.mxu0 0.0
        %1115 = vmatprep.subr.mxu0 0.0
        %1116 = vmatpush1.msra.mxu0 0.0
        %1117 = vmatprep.subr.mxu0 0.0
        %1118 = vmatpush1.msra.mxu0 0.0
        %1119 = vmatprep.subr.mxu0 0.0
        %1120 = vmatpush1.msra.mxu0 0.0
        %1121 = vmatprep.subr.mxu0 0.0
        %1122 = vmatpush1.msra.mxu0 0.0
        %1123 = vmatprep.subr.mxu0 0.0
        %1124 = vmatpush1.msra.mxu0 0.0
        %1125 = vmatprep.subr.mxu0 0.0
        %1126 = vmatpush1.msra.mxu0 0.0
        %1127 = vmatprep.subr.mxu0 0.0
        %1128 = vmatpush1.msra.mxu0 0.0
        %1129 = vmatprep.subr.mxu0 0.0
        %1130 = vmatpush1.msra.mxu0 0.0
        %1131 = vmatprep.subr.mxu0 0.0
        %1132 = vmatpush1.msra.mxu0 0.0
        %1133 = vmatprep.subr.mxu0 0.0
        %1134 = vmatpush1.msra.mxu0 0.0
        %1135 = vmatprep.subr.mxu0 0.0
        %1136 = vmatpush1.msra.mxu0 0.0
        %1137 = vmatprep.subr.mxu0 0.0
        %1138 = vmatpush1.msra.mxu0 0.0
        %1139 = vmatprep.subr.mxu0 0.0
        %1140 = vmatpush1.msra.mxu0 0.0
        %1141 = vmatprep.subr.mxu0 0.0
        %1142 = vmatpush1.msra.mxu0 0.0
        %1143 = vmatprep.subr.mxu0 0.0
        %1144 = vmatpush1.msra.mxu0 0.0
        %1145 = vmatprep.subr.mxu0 0.0
        %1146 = vmatpush1.msra.mxu0 0.0
        %1147 = vmatprep.subr.mxu0 0.0
        %1148 = vmatpush1.msra.mxu0 0.0
        %1149 = vmatprep.subr.mxu0 0.0
        %1150 = vmatpush1.msra.mxu0 0.0
        %1151 = vmatprep.subr.mxu0 0.0
        %1152 = vmatpush1.msra.mxu0 0.0
        %1153 = vmatprep.subr.mxu0 0.0
        %1154 = vmatpush1.msra.mxu0 0.0
        %1155 = vmatprep.subr.mxu0 0.0
        %1156 = vmatpush1.msra.mxu0 0.0
        %1157 = vmatprep.subr.mxu0 0.0
        %1158 = vmatpush1.msra.mxu0 0.0
        %1159 = vmatprep.mubr.f32.mxu0 0.0
        %v1160 = vand.u32 %v778, 4294901760
        %1161 = vmatmul.mubr.f32.gmra.mrb[0].mxu0 %v1160
        %v1162 = vpop.f32.mrb[0].mxu0
        %v1163 = vadd.f32 %v1086, %v1162
        %v1164 = vpop.f32.mrb[0].mxu0
        %1165 = vdwg.mxu0
        %1166 = vmatprep.subr.mxu0 0.0
        %v1167 = vand.u32 %v775, 4294901760
        %1168 = vmatpush1.msra.mxu0 %v1167
        %1169 = vmatprep.subr.mxu0 0.0
        %v1170 = vand.u32 %v776, 4294901760
        %1171 = vmatpush1.msra.mxu0 %v1170
        %1172 = vmatprep.subr.mxu0 0.0
        %1173 = vmatpush1.msra.mxu0 0.0
        %1174 = vmatprep.subr.mxu0 0.0
        %1175 = vmatpush1.msra.mxu0 0.0
        %1176 = vmatprep.subr.mxu0 0.0
        %1177 = vmatpush1.msra.mxu0 0.0
        %1178 = vmatprep.subr.mxu0 0.0
        %1179 = vmatpush1.msra.mxu0 0.0
        %1180 = vmatprep.subr.mxu0 0.0
        %1181 = vmatpush1.msra.mxu0 0.0
        %1182 = vmatprep.subr.mxu0 0.0
        %1183 = vmatpush1.msra.mxu0 0.0
        %1184 = vmatprep.subr.mxu0 0.0
        %1185 = vmatpush1.msra.mxu0 0.0
        %1186 = vmatprep.subr.mxu0 0.0
        %1187 = vmatpush1.msra.mxu0 0.0
        %1188 = vmatprep.subr.mxu0 0.0
        %1189 = vmatpush1.msra.mxu0 0.0
        %1190 = vmatprep.subr.mxu0 0.0
        %1191 = vmatpush1.msra.mxu0 0.0
        %1192 = vmatprep.subr.mxu0 0.0
        %1193 = vmatpush1.msra.mxu0 0.0
        %1194 = vmatprep.subr.mxu0 0.0
        %1195 = vmatpush1.msra.mxu0 0.0
        %1196 = vmatprep.subr.mxu0 0.0
        %1197 = vmatpush1.msra.mxu0 0.0
        %1198 = vmatprep.subr.mxu0 0.0
        %1199 = vmatpush1.msra.mxu0 0.0
        %1200 = vmatprep.subr.mxu0 0.0
        %1201 = vmatpush1.msra.mxu0 0.0
        %1202 = vmatprep.subr.mxu0 0.0
        %1203 = vmatpush1.msra.mxu0 0.0
        %1204 = vmatprep.subr.mxu0 0.0
        %1205 = vmatpush1.msra.mxu0 0.0
        %1206 = vmatprep.subr.mxu0 0.0
        %1207 = vmatpush1.msra.mxu0 0.0
        %1208 = vmatprep.subr.mxu0 0.0
        %1209 = vmatpush1.msra.mxu0 0.0
        %1210 = vmatprep.subr.mxu0 0.0
        %1211 = vmatpush1.msra.mxu0 0.0
        %1212 = vmatprep.subr.mxu0 0.0
        %1213 = vmatpush1.msra.mxu0 0.0
        %1214 = vmatprep.subr.mxu0 0.0
        %1215 = vmatpush1.msra.mxu0 0.0
        %1216 = vmatprep.subr.mxu0 0.0
        %1217 = vmatpush1.msra.mxu0 0.0
        %1218 = vmatprep.subr.mxu0 0.0
        %1219 = vmatpush1.msra.mxu0 0.0
        %1220 = vmatprep.subr.mxu0 0.0
        %1221 = vmatpush1.msra.mxu0 0.0
        %1222 = vmatprep.subr.mxu0 0.0
        %1223 = vmatpush1.msra.mxu0 0.0
        %1224 = vmatprep.subr.mxu0 0.0
        %1225 = vmatpush1.msra.mxu0 0.0
        %1226 = vmatprep.subr.mxu0 0.0
        %1227 = vmatpush1.msra.mxu0 0.0
        %1228 = vmatprep.subr.mxu0 0.0
        %1229 = vmatpush1.msra.mxu0 0.0
        %1230 = vmatprep.subr.mxu0 0.0
        %1231 = vmatpush1.msra.mxu0 0.0
        %1232 = vmatprep.mubr.f32.mxu0 0.0
        %v1233 = vand.u32 %v778, 4294901760
        %1234 = vmatmul.mubr.f32.gmra.mrb[0].mxu0 %v1233
        %v1235 = vpop.f32.mrb[0].mxu0
        %v1236 = vadd.f32 %v1163, %v1235
        %v1237 = vpop.f32.mrb[0].mxu0
        %1238 = vdwg.mxu0
        %1239 = vrot.lane.b32.xlu0 %v261, 80
        %v1240 = vpop.permute.xlu0 %1239
        %1241 = vrot.lane.b32.xlu0 %v262, 80
        %v1242 = vpop.permute.xlu0 %1241
        %v1245 = vsel %vm303, %v1240, 1.0
        %v1246 = vsel %vm303, %v1242, 1.0
        %v1248 = vsel %vm306, %v281, 0
        %1250 = vmatprep.subr.mxu0 0.0
        %v1251 = vand.u32 %v1245, 4294901760
        %1252 = vmatpush1.msra.mxu0 %v1251
        %1253 = vmatprep.subr.mxu0 0.0
        %v1254 = vand.u32 %v1246, 4294901760
        %1255 = vmatpush1.msra.mxu0 %v1254
        %1256 = vmatprep.subr.mxu0 0.0
        %1257 = vmatpush1.msra.mxu0 0.0
        %1258 = vmatprep.subr.mxu0 0.0
        %1259 = vmatpush1.msra.mxu0 0.0
        %1260 = vmatprep.subr.mxu0 0.0
        %1261 = vmatpush1.msra.mxu0 0.0
        %1262 = vmatprep.subr.mxu0 0.0
        %1263 = vmatpush1.msra.mxu0 0.0
        %1264 = vmatprep.subr.mxu0 0.0
        %1265 = vmatpush1.msra.mxu0 0.0
        %1266 = vmatprep.subr.mxu0 0.0
        %1267 = vmatpush1.msra.mxu0 0.0
        %1268 = vmatprep.subr.mxu0 0.0
        %1269 = vmatpush1.msra.mxu0 0.0
        %1270 = vmatprep.subr.mxu0 0.0
        %1271 = vmatpush1.msra.mxu0 0.0
        %1272 = vmatprep.subr.mxu0 0.0
        %1273 = vmatpush1.msra.mxu0 0.0
        %1274 = vmatprep.subr.mxu0 0.0
        %1275 = vmatpush1.msra.mxu0 0.0
        %1276 = vmatprep.subr.mxu0 0.0
        %1277 = vmatpush1.msra.mxu0 0.0
        %1278 = vmatprep.subr.mxu0 0.0
        %1279 = vmatpush1.msra.mxu0 0.0
        %1280 = vmatprep.subr.mxu0 0.0
        %1281 = vmatpush1.msra.mxu0 0.0
        %1282 = vmatprep.subr.mxu0 0.0
        %1283 = vmatpush1.msra.mxu0 0.0
        %1284 = vmatprep.subr.mxu0 0.0
        %1285 = vmatpush1.msra.mxu0 0.0
        %1286 = vmatprep.subr.mxu0 0.0
        %1287 = vmatpush1.msra.mxu0 0.0
        %1288 = vmatprep.subr.mxu0 0.0
        %1289 = vmatpush1.msra.mxu0 0.0
        %1290 = vmatprep.subr.mxu0 0.0
        %1291 = vmatpush1.msra.mxu0 0.0
        %1292 = vmatprep.subr.mxu0 0.0
        %1293 = vmatpush1.msra.mxu0 0.0
        %1294 = vmatprep.subr.mxu0 0.0
        %1295 = vmatpush1.msra.mxu0 0.0
        %1296 = vmatprep.subr.mxu0 0.0
        %1297 = vmatpush1.msra.mxu0 0.0
        %1298 = vmatprep.subr.mxu0 0.0
        %1299 = vmatpush1.msra.mxu0 0.0
        %1300 = vmatprep.subr.mxu0 0.0
        %1301 = vmatpush1.msra.mxu0 0.0
        %1302 = vmatprep.subr.mxu0 0.0
        %1303 = vmatpush1.msra.mxu0 0.0
        %1304 = vmatprep.subr.mxu0 0.0
        %1305 = vmatpush1.msra.mxu0 0.0
        %1306 = vmatprep.subr.mxu0 0.0
        %1307 = vmatpush1.msra.mxu0 0.0
        %1308 = vmatprep.subr.mxu0 0.0
        %1309 = vmatpush1.msra.mxu0 0.0
        %1310 = vmatprep.subr.mxu0 0.0
        %1311 = vmatpush1.msra.mxu0 0.0
        %1312 = vmatprep.subr.mxu0 0.0
        %1313 = vmatpush1.msra.mxu0 0.0
        %1314 = vmatprep.subr.mxu0 0.0
        %1315 = vmatpush1.msra.mxu0 0.0
        %1316 = vmatprep.mubr.f32.mxu0 0.0
        %v1317 = vand.u32 %v1248, 4294901760
        %v1318 = vsub.f32 %v1248, %v1317
        %v1319 = vand.u32 %v1318, 4294901760
        %v1320 = vsub.f32 %v1318, %v1319
        %v1321 = vand.u32 %v1320, 4294901760
        %1322 = vmatmul.mubr.f32.gmra.mrb[0].mxu0 %v1321
        %v1323 = vpop.f32.mrb[0].mxu0
        %v1324 = vadd.f32 0.0, %v1323
        %v1325 = vpop.f32.mrb[0].mxu0
        %1326 = vdwg.mxu0
        %1327 = vmatprep.subr.mxu0 0.0
        %v1328 = vand.u32 %v1245, 4294901760
        %v1329 = vsub.f32 %v1245, %v1328
        %v1330 = vand.u32 %v1329, 4294901760
        %v1331 = vsub.f32 %v1329, %v1330
        %v1332 = vand.u32 %v1331, 4294901760
        %1333 = vmatpush1.msra.mxu0 %v1332
        %1334 = vmatprep.subr.mxu0 0.0
        %v1335 = vand.u32 %v1246, 4294901760
        %v1336 = vsub.f32 %v1246, %v1335
        %v1337 = vand.u32 %v1336, 4294901760
        %v1338 = vsub.f32 %v1336, %v1337
        %v1339 = vand.u32 %v1338, 4294901760
        %1340 = vmatpush1.msra.mxu0 %v1339
        %1341 = vmatprep.subr.mxu0 0.0
        %1342 = vmatpush1.msra.mxu0 0.0
        %1343 = vmatprep.subr.mxu0 0.0
        %1344 = vmatpush1.msra.mxu0 0.0
        %1345 = vmatprep.subr.mxu0 0.0
        %1346 = vmatpush1.msra.mxu0 0.0
        %1347 = vmatprep.subr.mxu0 0.0
        %1348 = vmatpush1.msra.mxu0 0.0
        %1349 = vmatprep.subr.mxu0 0.0
        %1350 = vmatpush1.msra.mxu0 0.0
        %1351 = vmatprep.subr.mxu0 0.0
        %1352 = vmatpush1.msra.mxu0 0.0
        %1353 = vmatprep.subr.mxu0 0.0
        %1354 = vmatpush1.msra.mxu0 0.0
        %1355 = vmatprep.subr.mxu0 0.0
        %1356 = vmatpush1.msra.mxu0 0.0
        %1357 = vmatprep.subr.mxu0 0.0
        %1358 = vmatpush1.msra.mxu0 0.0
        %1359 = vmatprep.subr.mxu0 0.0
        %1360 = vmatpush1.msra.mxu0 0.0
        %1361 = vmatprep.subr.mxu0 0.0
        %1362 = vmatpush1.msra.mxu0 0.0
        %1363 = vmatprep.subr.mxu0 0.0
        %1364 = vmatpush1.msra.mxu0 0.0
        %1365 = vmatprep.subr.mxu0 0.0
        %1366 = vmatpush1.msra.mxu0 0.0
        %1367 = vmatprep.subr.mxu0 0.0
        %1368 = vmatpush1.msra.mxu0 0.0
        %1369 = vmatprep.subr.mxu0 0.0
        %1370 = vmatpush1.msra.mxu0 0.0
        %1371 = vmatprep.subr.mxu0 0.0
        %1372 = vmatpush1.msra.mxu0 0.0
        %1373 = vmatprep.subr.mxu0 0.0
        %1374 = vmatpush1.msra.mxu0 0.0
        %1375 = vmatprep.subr.mxu0 0.0
        %1376 = vmatpush1.msra.mxu0 0.0
        %1377 = vmatprep.subr.mxu0 0.0
        %1378 = vmatpush1.msra.mxu0 0.0
        %1379 = vmatprep.subr.mxu0 0.0
        %1380 = vmatpush1.msra.mxu0 0.0
        %1381 = vmatprep.subr.mxu0 0.0
        %1382 = vmatpush1.msra.mxu0 0.0
        %1383 = vmatprep.subr.mxu0 0.0
        %1384 = vmatpush1.msra.mxu0 0.0
        %1385 = vmatprep.subr.mxu0 0.0
        %1386 = vmatpush1.msra.mxu0 0.0
        %1387 = vmatprep.subr.mxu0 0.0
        %1388 = vmatpush1.msra.mxu0 0.0
        %1389 = vmatprep.subr.mxu0 0.0
        %1390 = vmatpush1.msra.mxu0 0.0
        %1391 = vmatprep.subr.mxu0 0.0
        %1392 = vmatpush1.msra.mxu0 0.0
        %1393 = vmatprep.subr.mxu0 0.0
        %1394 = vmatpush1.msra.mxu0 0.0
        %1395 = vmatprep.subr.mxu0 0.0
        %1396 = vmatpush1.msra.mxu0 0.0
        %1397 = vmatprep.subr.mxu0 0.0
        %1398 = vmatpush1.msra.mxu0 0.0
        %1399 = vmatprep.subr.mxu0 0.0
        %1400 = vmatpush1.msra.mxu0 0.0
        %1401 = vmatprep.mubr.f32.mxu0 0.0
        %v1402 = vand.u32 %v1248, 4294901760
        %1403 = vmatmul.mubr.f32.gmra.mrb[0].mxu0 %v1402
        %v1404 = vpop.f32.mrb[0].mxu0
        %v1405 = vadd.f32 %v1324, %v1404
        %v1406 = vpop.f32.mrb[0].mxu0
        %1407 = vdwg.mxu0
        %1408 = vmatprep.subr.mxu0 0.0
        %v1409 = vand.u32 %v1245, 4294901760
        %v1410 = vsub.f32 %v1245, %v1409
        %1411 = vmatpush1.msra.mxu0 %v1410
        %1412 = vmatprep.subr.mxu0 0.0
        %v1413 = vand.u32 %v1246, 4294901760
        %v1414 = vsub.f32 %v1246, %v1413
        %1415 = vmatpush1.msra.mxu0 %v1414
        %1416 = vmatprep.subr.mxu0 0.0
        %1417 = vmatpush1.msra.mxu0 0.0
        %1418 = vmatprep.subr.mxu0 0.0
        %1419 = vmatpush1.msra.mxu0 0.0
        %1420 = vmatprep.subr.mxu0 0.0
        %1421 = vmatpush1.msra.mxu0 0.0
        %1422 = vmatprep.subr.mxu0 0.0
        %1423 = vmatpush1.msra.mxu0 0.0
        %1424 = vmatprep.subr.mxu0 0.0
        %1425 = vmatpush1.msra.mxu0 0.0
        %1426 = vmatprep.subr.mxu0 0.0
        %1427 = vmatpush1.msra.mxu0 0.0
        %1428 = vmatprep.subr.mxu0 0.0
        %1429 = vmatpush1.msra.mxu0 0.0
        %1430 = vmatprep.subr.mxu0 0.0
        %1431 = vmatpush1.msra.mxu0 0.0
        %1432 = vmatprep.subr.mxu0 0.0
        %1433 = vmatpush1.msra.mxu0 0.0
        %1434 = vmatprep.subr.mxu0 0.0
        %1435 = vmatpush1.msra.mxu0 0.0
        %1436 = vmatprep.subr.mxu0 0.0
        %1437 = vmatpush1.msra.mxu0 0.0
        %1438 = vmatprep.subr.mxu0 0.0
        %1439 = vmatpush1.msra.mxu0 0.0
        %1440 = vmatprep.subr.mxu0 0.0
        %1441 = vmatpush1.msra.mxu0 0.0
        %1442 = vmatprep.subr.mxu0 0.0
        %1443 = vmatpush1.msra.mxu0 0.0
        %1444 = vmatprep.subr.mxu0 0.0
        %1445 = vmatpush1.msra.mxu0 0.0
        %1446 = vmatprep.subr.mxu0 0.0
        %1447 = vmatpush1.msra.mxu0 0.0
        %1448 = vmatprep.subr.mxu0 0.0
        %1449 = vmatpush1.msra.mxu0 0.0
        %1450 = vmatprep.subr.mxu0 0.0
        %1451 = vmatpush1.msra.mxu0 0.0
        %1452 = vmatprep.subr.mxu0 0.0
        %1453 = vmatpush1.msra.mxu0 0.0
        %1454 = vmatprep.subr.mxu0 0.0
        %1455 = vmatpush1.msra.mxu0 0.0
        %1456 = vmatprep.subr.mxu0 0.0
        %1457 = vmatpush1.msra.mxu0 0.0
        %1458 = vmatprep.subr.mxu0 0.0
        %1459 = vmatpush1.msra.mxu0 0.0
        %1460 = vmatprep.subr.mxu0 0.0
        %1461 = vmatpush1.msra.mxu0 0.0
        %1462 = vmatprep.subr.mxu0 0.0
        %1463 = vmatpush1.msra.mxu0 0.0
        %1464 = vmatprep.subr.mxu0 0.0
        %1465 = vmatpush1.msra.mxu0 0.0
        %1466 = vmatprep.subr.mxu0 0.0
        %1467 = vmatpush1.msra.mxu0 0.0
        %1468 = vmatprep.subr.mxu0 0.0
        %1469 = vmatpush1.msra.mxu0 0.0
        %1470 = vmatprep.subr.mxu0 0.0
        %1471 = vmatpush1.msra.mxu0 0.0
        %1472 = vmatprep.subr.mxu0 0.0
        %1473 = vmatpush1.msra.mxu0 0.0
        %1474 = vmatprep.subr.mxu0 0.0
        %1475 = vmatpush1.msra.mxu0 0.0
        %1476 = vmatprep.mubr.f32.mxu0 0.0
        %v1477 = vand.u32 %v1248, 4294901760
        %v1478 = vsub.f32 %v1248, %v1477
        %1479 = vmatmul.mubr.f32.gmra.mrb[0].mxu0 %v1478
        %v1480 = vpop.f32.mrb[0].mxu0
        %v1481 = vadd.f32 %v1405, %v1480
        %v1482 = vpop.f32.mrb[0].mxu0
        %1483 = vdwg.mxu0
        %1484 = vmatprep.subr.mxu0 0.0
        %v1485 = vand.u32 %v1245, 4294901760
        %1486 = vmatpush1.msra.mxu0 %v1485
        %1487 = vmatprep.subr.mxu0 0.0
        %v1488 = vand.u32 %v1246, 4294901760
        %1489 = vmatpush1.msra.mxu0 %v1488
        %1490 = vmatprep.subr.mxu0 0.0
        %1491 = vmatpush1.msra.mxu0 0.0
        %1492 = vmatprep.subr.mxu0 0.0
        %1493 = vmatpush1.msra.mxu0 0.0
        %1494 = vmatprep.subr.mxu0 0.0
        %1495 = vmatpush1.msra.mxu0 0.0
        %1496 = vmatprep.subr.mxu0 0.0
        %1497 = vmatpush1.msra.mxu0 0.0
        %1498 = vmatprep.subr.mxu0 0.0
        %1499 = vmatpush1.msra.mxu0 0.0
        %1500 = vmatprep.subr.mxu0 0.0
        %1501 = vmatpush1.msra.mxu0 0.0
        %1502 = vmatprep.subr.mxu0 0.0
        %1503 = vmatpush1.msra.mxu0 0.0
        %1504 = vmatprep.subr.mxu0 0.0
        %1505 = vmatpush1.msra.mxu0 0.0
        %1506 = vmatprep.subr.mxu0 0.0
        %1507 = vmatpush1.msra.mxu0 0.0
        %1508 = vmatprep.subr.mxu0 0.0
        %1509 = vmatpush1.msra.mxu0 0.0
        %1510 = vmatprep.subr.mxu0 0.0
        %1511 = vmatpush1.msra.mxu0 0.0
        %1512 = vmatprep.subr.mxu0 0.0
        %1513 = vmatpush1.msra.mxu0 0.0
        %1514 = vmatprep.subr.mxu0 0.0
        %1515 = vmatpush1.msra.mxu0 0.0
        %1516 = vmatprep.subr.mxu0 0.0
        %1517 = vmatpush1.msra.mxu0 0.0
        %1518 = vmatprep.subr.mxu0 0.0
        %1519 = vmatpush1.msra.mxu0 0.0
        %1520 = vmatprep.subr.mxu0 0.0
        %1521 = vmatpush1.msra.mxu0 0.0
        %1522 = vmatprep.subr.mxu0 0.0
        %1523 = vmatpush1.msra.mxu0 0.0
        %1524 = vmatprep.subr.mxu0 0.0
        %1525 = vmatpush1.msra.mxu0 0.0
        %1526 = vmatprep.subr.mxu0 0.0
        %1527 = vmatpush1.msra.mxu0 0.0
        %1528 = vmatprep.subr.mxu0 0.0
        %1529 = vmatpush1.msra.mxu0 0.0
        %1530 = vmatprep.subr.mxu0 0.0
        %1531 = vmatpush1.msra.mxu0 0.0
        %1532 = vmatprep.subr.mxu0 0.0
        %1533 = vmatpush1.msra.mxu0 0.0
        %1534 = vmatprep.subr.mxu0 0.0
        %1535 = vmatpush1.msra.mxu0 0.0
        %1536 = vmatprep.subr.mxu0 0.0
        %1537 = vmatpush1.msra.mxu0 0.0
        %1538 = vmatprep.subr.mxu0 0.0
        %1539 = vmatpush1.msra.mxu0 0.0
        %1540 = vmatprep.subr.mxu0 0.0
        %1541 = vmatpush1.msra.mxu0 0.0
        %1542 = vmatprep.subr.mxu0 0.0
        %1543 = vmatpush1.msra.mxu0 0.0
        %1544 = vmatprep.subr.mxu0 0.0
        %1545 = vmatpush1.msra.mxu0 0.0
        %1546 = vmatprep.subr.mxu0 0.0
        %1547 = vmatpush1.msra.mxu0 0.0
        %1548 = vmatprep.subr.mxu0 0.0
        %1549 = vmatpush1.msra.mxu0 0.0
        %1550 = vmatprep.mubr.f32.mxu0 0.0
        %v1551 = vand.u32 %v1248, 4294901760
        %v1552 = vsub.f32 %v1248, %v1551
        %v1553 = vand.u32 %v1552, 4294901760
        %1554 = vmatmul.mubr.f32.gmra.mrb[0].mxu0 %v1553
        %v1555 = vpop.f32.mrb[0].mxu0
        %v1556 = vadd.f32 %v1481, %v1555
        %v1557 = vpop.f32.mrb[0].mxu0
        %1558 = vdwg.mxu0
        %1559 = vmatprep.subr.mxu0 0.0
        %v1560 = vand.u32 %v1245, 4294901760
        %v1561 = vsub.f32 %v1245, %v1560
        %v1562 = vand.u32 %v1561, 4294901760
        %1563 = vmatpush1.msra.mxu0 %v1562
        %1564 = vmatprep.subr.mxu0 0.0
        %v1565 = vand.u32 %v1246, 4294901760
        %v1566 = vsub.f32 %v1246, %v1565
        %v1567 = vand.u32 %v1566, 4294901760
        %1568 = vmatpush1.msra.mxu0 %v1567
        %1569 = vmatprep.subr.mxu0 0.0
        %1570 = vmatpush1.msra.mxu0 0.0
        %1571 = vmatprep.subr.mxu0 0.0
        %1572 = vmatpush1.msra.mxu0 0.0
        %1573 = vmatprep.subr.mxu0 0.0
        %1574 = vmatpush1.msra.mxu0 0.0
        %1575 = vmatprep.subr.mxu0 0.0
        %1576 = vmatpush1.msra.mxu0 0.0
        %1577 = vmatprep.subr.mxu0 0.0
        %1578 = vmatpush1.msra.mxu0 0.0
        %1579 = vmatprep.subr.mxu0 0.0
        %1580 = vmatpush1.msra.mxu0 0.0
        %1581 = vmatprep.subr.mxu0 0.0
        %1582 = vmatpush1.msra.mxu0 0.0
        %1583 = vmatprep.subr.mxu0 0.0
        %1584 = vmatpush1.msra.mxu0 0.0
        %1585 = vmatprep.subr.mxu0 0.0
        %1586 = vmatpush1.msra.mxu0 0.0
        %1587 = vmatprep.subr.mxu0 0.0
        %1588 = vmatpush1.msra.mxu0 0.0
        %1589 = vmatprep.subr.mxu0 0.0
        %1590 = vmatpush1.msra.mxu0 0.0
        %1591 = vmatprep.subr.mxu0 0.0
        %1592 = vmatpush1.msra.mxu0 0.0
        %1593 = vmatprep.subr.mxu0 0.0
        %1594 = vmatpush1.msra.mxu0 0.0
        %1595 = vmatprep.subr.mxu0 0.0
        %1596 = vmatpush1.msra.mxu0 0.0
        %1597 = vmatprep.subr.mxu0 0.0
        %1598 = vmatpush1.msra.mxu0 0.0
        %1599 = vmatprep.subr.mxu0 0.0
        %1600 = vmatpush1.msra.mxu0 0.0
        %1601 = vmatprep.subr.mxu0 0.0
        %1602 = vmatpush1.msra.mxu0 0.0
        %1603 = vmatprep.subr.mxu0 0.0
        %1604 = vmatpush1.msra.mxu0 0.0
        %1605 = vmatprep.subr.mxu0 0.0
        %1606 = vmatpush1.msra.mxu0 0.0
        %1607 = vmatprep.subr.mxu0 0.0
        %1608 = vmatpush1.msra.mxu0 0.0
        %1609 = vmatprep.subr.mxu0 0.0
        %1610 = vmatpush1.msra.mxu0 0.0
        %1611 = vmatprep.subr.mxu0 0.0
        %1612 = vmatpush1.msra.mxu0 0.0
        %1613 = vmatprep.subr.mxu0 0.0
        %1614 = vmatpush1.msra.mxu0 0.0
        %1615 = vmatprep.subr.mxu0 0.0
        %1616 = vmatpush1.msra.mxu0 0.0
        %1617 = vmatprep.subr.mxu0 0.0
        %1618 = vmatpush1.msra.mxu0 0.0
        %1619 = vmatprep.subr.mxu0 0.0
        %1620 = vmatpush1.msra.mxu0 0.0
        %1621 = vmatprep.subr.mxu0 0.0
        %1622 = vmatpush1.msra.mxu0 0.0
        %1623 = vmatprep.subr.mxu0 0.0
        %1624 = vmatpush1.msra.mxu0 0.0
        %1625 = vmatprep.subr.mxu0 0.0
        %1626 = vmatpush1.msra.mxu0 0.0
        %1627 = vmatprep.subr.mxu0 0.0
        %1628 = vmatpush1.msra.mxu0 0.0
        %1629 = vmatprep.mubr.f32.mxu0 0.0
        %v1630 = vand.u32 %v1248, 4294901760
        %1631 = vmatmul.mubr.f32.gmra.mrb[0].mxu0 %v1630
        %v1632 = vpop.f32.mrb[0].mxu0
        %v1633 = vadd.f32 %v1556, %v1632
        %v1634 = vpop.f32.mrb[0].mxu0
        %1635 = vdwg.mxu0
        %1636 = vmatprep.subr.mxu0 0.0
        %v1637 = vand.u32 %v1245, 4294901760
        %1638 = vmatpush1.msra.mxu0 %v1637
        %1639 = vmatprep.subr.mxu0 0.0
        %v1640 = vand.u32 %v1246, 4294901760
        %1641 = vmatpush1.msra.mxu0 %v1640
        %1642 = vmatprep.subr.mxu0 0.0
        %1643 = vmatpush1.msra.mxu0 0.0
        %1644 = vmatprep.subr.mxu0 0.0
        %1645 = vmatpush1.msra.mxu0 0.0
        %1646 = vmatprep.subr.mxu0 0.0
        %1647 = vmatpush1.msra.mxu0 0.0
        %1648 = vmatprep.subr.mxu0 0.0
        %1649 = vmatpush1.msra.mxu0 0.0
        %1650 = vmatprep.subr.mxu0 0.0
        %1651 = vmatpush1.msra.mxu0 0.0
        %1652 = vmatprep.subr.mxu0 0.0
        %1653 = vmatpush1.msra.mxu0 0.0
        %1654 = vmatprep.subr.mxu0 0.0
        %1655 = vmatpush1.msra.mxu0 0.0
        %1656 = vmatprep.subr.mxu0 0.0
        %1657 = vmatpush1.msra.mxu0 0.0
        %1658 = vmatprep.subr.mxu0 0.0
        %1659 = vmatpush1.msra.mxu0 0.0
        %1660 = vmatprep.subr.mxu0 0.0
        %1661 = vmatpush1.msra.mxu0 0.0
        %1662 = vmatprep.subr.mxu0 0.0
        %1663 = vmatpush1.msra.mxu0 0.0
        %1664 = vmatprep.subr.mxu0 0.0
        %1665 = vmatpush1.msra.mxu0 0.0
        %1666 = vmatprep.subr.mxu0 0.0
        %1667 = vmatpush1.msra.mxu0 0.0
        %1668 = vmatprep.subr.mxu0 0.0
        %1669 = vmatpush1.msra.mxu0 0.0
        %1670 = vmatprep.subr.mxu0 0.0
        %1671 = vmatpush1.msra.mxu0 0.0
        %1672 = vmatprep.subr.mxu0 0.0
        %1673 = vmatpush1.msra.mxu0 0.0
        %1674 = vmatprep.subr.mxu0 0.0
        %1675 = vmatpush1.msra.mxu0 0.0
        %1676 = vmatprep.subr.mxu0 0.0
        %1677 = vmatpush1.msra.mxu0 0.0
        %1678 = vmatprep.subr.mxu0 0.0
        %1679 = vmatpush1.msra.mxu0 0.0
        %1680 = vmatprep.subr.mxu0 0.0
        %1681 = vmatpush1.msra.mxu0 0.0
        %1682 = vmatprep.subr.mxu0 0.0
        %1683 = vmatpush1.msra.mxu0 0.0
        %1684 = vmatprep.subr.mxu0 0.0
        %1685 = vmatpush1.msra.mxu0 0.0
        %1686 = vmatprep.subr.mxu0 0.0
        %1687 = vmatpush1.msra.mxu0 0.0
        %1688 = vmatprep.subr.mxu0 0.0
        %1689 = vmatpush1.msra.mxu0 0.0
        %1690 = vmatprep.subr.mxu0 0.0
        %1691 = vmatpush1.msra.mxu0 0.0
        %1692 = vmatprep.subr.mxu0 0.0
        %1693 = vmatpush1.msra.mxu0 0.0
        %1694 = vmatprep.subr.mxu0 0.0
        %1695 = vmatpush1.msra.mxu0 0.0
        %1696 = vmatprep.subr.mxu0 0.0
        %1697 = vmatpush1.msra.mxu0 0.0
        %1698 = vmatprep.subr.mxu0 0.0
        %1699 = vmatpush1.msra.mxu0 0.0
        %1700 = vmatprep.subr.mxu0 0.0
        %1701 = vmatpush1.msra.mxu0 0.0
        %1702 = vmatprep.mubr.f32.mxu0 0.0
        %v1703 = vand.u32 %v1248, 4294901760
        %1704 = vmatmul.mubr.f32.gmra.mrb[0].mxu0 %v1703
        %v1705 = vpop.f32.mrb[0].mxu0
        %v1706 = vadd.f32 %v1633, %v1705
        %v1707 = vpop.f32.mrb[0].mxu0
        %1708 = vdwg.mxu0
        %1709 = vrot.lane.b32.xlu0 %v261, 72
        %v1710 = vpop.permute.xlu0 %1709
        %1711 = vrot.lane.b32.xlu0 %v262, 72
        %v1712 = vpop.permute.xlu0 %1711
        %v1715 = vsel %vm303, %v1710, 1.0
        %v1716 = vsel %vm303, %v1712, 1.0
        %v1718 = vsel %vm306, %v282, 0
        %1720 = vmatprep.subr.mxu0 0.0
        %v1721 = vand.u32 %v1715, 4294901760
        %1722 = vmatpush1.msra.mxu0 %v1721
        %1723 = vmatprep.subr.mxu0 0.0
        %v1724 = vand.u32 %v1716, 4294901760
        %1725 = vmatpush1.msra.mxu0 %v1724
        %1726 = vmatprep.subr.mxu0 0.0
        %1727 = vmatpush1.msra.mxu0 0.0
        %1728 = vmatprep.subr.mxu0 0.0
        %1729 = vmatpush1.msra.mxu0 0.0
        %1730 = vmatprep.subr.mxu0 0.0
        %1731 = vmatpush1.msra.mxu0 0.0
        %1732 = vmatprep.subr.mxu0 0.0
        %1733 = vmatpush1.msra.mxu0 0.0
        %1734 = vmatprep.subr.mxu0 0.0
        %1735 = vmatpush1.msra.mxu0 0.0
        %1736 = vmatprep.subr.mxu0 0.0
        %1737 = vmatpush1.msra.mxu0 0.0
        %1738 = vmatprep.subr.mxu0 0.0
        %1739 = vmatpush1.msra.mxu0 0.0
        %1740 = vmatprep.subr.mxu0 0.0
        %1741 = vmatpush1.msra.mxu0 0.0
        %1742 = vmatprep.subr.mxu0 0.0
        %1743 = vmatpush1.msra.mxu0 0.0
        %1744 = vmatprep.subr.mxu0 0.0
        %1745 = vmatpush1.msra.mxu0 0.0
        %1746 = vmatprep.subr.mxu0 0.0
        %1747 = vmatpush1.msra.mxu0 0.0
        %1748 = vmatprep.subr.mxu0 0.0
        %1749 = vmatpush1.msra.mxu0 0.0
        %1750 = vmatprep.subr.mxu0 0.0
        %1751 = vmatpush1.msra.mxu0 0.0
        %1752 = vmatprep.subr.mxu0 0.0
        %1753 = vmatpush1.msra.mxu0 0.0
        %1754 = vmatprep.subr.mxu0 0.0
        %1755 = vmatpush1.msra.mxu0 0.0
        %1756 = vmatprep.subr.mxu0 0.0
        %1757 = vmatpush1.msra.mxu0 0.0
        %1758 = vmatprep.subr.mxu0 0.0
        %1759 = vmatpush1.msra.mxu0 0.0
        %1760 = vmatprep.subr.mxu0 0.0
        %1761 = vmatpush1.msra.mxu0 0.0
        %1762 = vmatprep.subr.mxu0 0.0
        %1763 = vmatpush1.msra.mxu0 0.0
        %1764 = vmatprep.subr.mxu0 0.0
        %1765 = vmatpush1.msra.mxu0 0.0
        %1766 = vmatprep.subr.mxu0 0.0
        %1767 = vmatpush1.msra.mxu0 0.0
        %1768 = vmatprep.subr.mxu0 0.0
        %1769 = vmatpush1.msra.mxu0 0.0
        %1770 = vmatprep.subr.mxu0 0.0
        %1771 = vmatpush1.msra.mxu0 0.0
        %1772 = vmatprep.subr.mxu0 0.0
        %1773 = vmatpush1.msra.mxu0 0.0
        %1774 = vmatprep.subr.mxu0 0.0
        %1775 = vmatpush1.msra.mxu0 0.0
        %1776 = vmatprep.subr.mxu0 0.0
        %1777 = vmatpush1.msra.mxu0 0.0
        %1778 = vmatprep.subr.mxu0 0.0
        %1779 = vmatpush1.msra.mxu0 0.0
        %1780 = vmatprep.subr.mxu0 0.0
        %1781 = vmatpush1.msra.mxu0 0.0
        %1782 = vmatprep.subr.mxu0 0.0
        %1783 = vmatpush1.msra.mxu0 0.0
        %1784 = vmatprep.subr.mxu0 0.0
        %1785 = vmatpush1.msra.mxu0 0.0
        %1786 = vmatprep.mubr.f32.mxu0 0.0
        %v1787 = vand.u32 %v1718, 4294901760
        %v1788 = vsub.f32 %v1718, %v1787
        %v1789 = vand.u32 %v1788, 4294901760
        %v1790 = vsub.f32 %v1788, %v1789
        %v1791 = vand.u32 %v1790, 4294901760
        %1792 = vmatmul.mubr.f32.gmra.mrb[0].mxu0 %v1791
        %v1793 = vpop.f32.mrb[0].mxu0
        %v1794 = vadd.f32 0.0, %v1793
        %v1795 = vpop.f32.mrb[0].mxu0
        %1796 = vdwg.mxu0
        %1797 = vmatprep.subr.mxu0 0.0
        %v1798 = vand.u32 %v1715, 4294901760
        %v1799 = vsub.f32 %v1715, %v1798
        %v1800 = vand.u32 %v1799, 4294901760
        %v1801 = vsub.f32 %v1799, %v1800
        %v1802 = vand.u32 %v1801, 4294901760
        %1803 = vmatpush1.msra.mxu0 %v1802
        %1804 = vmatprep.subr.mxu0 0.0
        %v1805 = vand.u32 %v1716, 4294901760
        %v1806 = vsub.f32 %v1716, %v1805
        %v1807 = vand.u32 %v1806, 4294901760
        %v1808 = vsub.f32 %v1806, %v1807
        %v1809 = vand.u32 %v1808, 4294901760
        %1810 = vmatpush1.msra.mxu0 %v1809
        %1811 = vmatprep.subr.mxu0 0.0
        %1812 = vmatpush1.msra.mxu0 0.0
        %1813 = vmatprep.subr.mxu0 0.0
        %1814 = vmatpush1.msra.mxu0 0.0
        %1815 = vmatprep.subr.mxu0 0.0
        %1816 = vmatpush1.msra.mxu0 0.0
        %1817 = vmatprep.subr.mxu0 0.0
        %1818 = vmatpush1.msra.mxu0 0.0
        %1819 = vmatprep.subr.mxu0 0.0
        %1820 = vmatpush1.msra.mxu0 0.0
        %1821 = vmatprep.subr.mxu0 0.0
        %1822 = vmatpush1.msra.mxu0 0.0
        %1823 = vmatprep.subr.mxu0 0.0
        %1824 = vmatpush1.msra.mxu0 0.0
        %1825 = vmatprep.subr.mxu0 0.0
        %1826 = vmatpush1.msra.mxu0 0.0
        %1827 = vmatprep.subr.mxu0 0.0
        %1828 = vmatpush1.msra.mxu0 0.0
        %1829 = vmatprep.subr.mxu0 0.0
        %1830 = vmatpush1.msra.mxu0 0.0
        %1831 = vmatprep.subr.mxu0 0.0
        %1832 = vmatpush1.msra.mxu0 0.0
        %1833 = vmatprep.subr.mxu0 0.0
        %1834 = vmatpush1.msra.mxu0 0.0
        %1835 = vmatprep.subr.mxu0 0.0
        %1836 = vmatpush1.msra.mxu0 0.0
        %1837 = vmatprep.subr.mxu0 0.0
        %1838 = vmatpush1.msra.mxu0 0.0
        %1839 = vmatprep.subr.mxu0 0.0
        %1840 = vmatpush1.msra.mxu0 0.0
        %1841 = vmatprep.subr.mxu0 0.0
        %1842 = vmatpush1.msra.mxu0 0.0
        %1843 = vmatprep.subr.mxu0 0.0
        %1844 = vmatpush1.msra.mxu0 0.0
        %1845 = vmatprep.subr.mxu0 0.0
        %1846 = vmatpush1.msra.mxu0 0.0
        %1847 = vmatprep.subr.mxu0 0.0
        %1848 = vmatpush1.msra.mxu0 0.0
        %1849 = vmatprep.subr.mxu0 0.0
        %1850 = vmatpush1.msra.mxu0 0.0
        %1851 = vmatprep.subr.mxu0 0.0
        %1852 = vmatpush1.msra.mxu0 0.0
        %1853 = vmatprep.subr.mxu0 0.0
        %1854 = vmatpush1.msra.mxu0 0.0
        %1855 = vmatprep.subr.mxu0 0.0
        %1856 = vmatpush1.msra.mxu0 0.0
        %1857 = vmatprep.subr.mxu0 0.0
        %1858 = vmatpush1.msra.mxu0 0.0
        %1859 = vmatprep.subr.mxu0 0.0
        %1860 = vmatpush1.msra.mxu0 0.0
        %1861 = vmatprep.subr.mxu0 0.0
        %1862 = vmatpush1.msra.mxu0 0.0
        %1863 = vmatprep.subr.mxu0 0.0
        %1864 = vmatpush1.msra.mxu0 0.0
        %1865 = vmatprep.subr.mxu0 0.0
        %1866 = vmatpush1.msra.mxu0 0.0
        %1867 = vmatprep.subr.mxu0 0.0
        %1868 = vmatpush1.msra.mxu0 0.0
        %1869 = vmatprep.subr.mxu0 0.0
        %1870 = vmatpush1.msra.mxu0 0.0
        %1871 = vmatprep.mubr.f32.mxu0 0.0
        %v1872 = vand.u32 %v1718, 4294901760
        %1873 = vmatmul.mubr.f32.gmra.mrb[0].mxu0 %v1872
        %v1874 = vpop.f32.mrb[0].mxu0
        %v1875 = vadd.f32 %v1794, %v1874
        %v1876 = vpop.f32.mrb[0].mxu0
        %1877 = vdwg.mxu0
        %1878 = vmatprep.subr.mxu0 0.0
        %v1879 = vand.u32 %v1715, 4294901760
        %v1880 = vsub.f32 %v1715, %v1879
        %1881 = vmatpush1.msra.mxu0 %v1880
        %1882 = vmatprep.subr.mxu0 0.0
        %v1883 = vand.u32 %v1716, 4294901760
        %v1884 = vsub.f32 %v1716, %v1883
        %1885 = vmatpush1.msra.mxu0 %v1884
        %1886 = vmatprep.subr.mxu0 0.0
        %1887 = vmatpush1.msra.mxu0 0.0
        %1888 = vmatprep.subr.mxu0 0.0
        %1889 = vmatpush1.msra.mxu0 0.0
        %1890 = vmatprep.subr.mxu0 0.0
        %1891 = vmatpush1.msra.mxu0 0.0
        %1892 = vmatprep.subr.mxu0 0.0
        %1893 = vmatpush1.msra.mxu0 0.0
        %1894 = vmatprep.subr.mxu0 0.0
        %1895 = vmatpush1.msra.mxu0 0.0
        %1896 = vmatprep.subr.mxu0 0.0
        %1897 = vmatpush1.msra.mxu0 0.0
        %1898 = vmatprep.subr.mxu0 0.0
        %1899 = vmatpush1.msra.mxu0 0.0
        %1900 = vmatprep.subr.mxu0 0.0
        %1901 = vmatpush1.msra.mxu0 0.0
        %1902 = vmatprep.subr.mxu0 0.0
        %1903 = vmatpush1.msra.mxu0 0.0
        %1904 = vmatprep.subr.mxu0 0.0
        %1905 = vmatpush1.msra.mxu0 0.0
        %1906 = vmatprep.subr.mxu0 0.0
        %1907 = vmatpush1.msra.mxu0 0.0
        %1908 = vmatprep.subr.mxu0 0.0
        %1909 = vmatpush1.msra.mxu0 0.0
        %1910 = vmatprep.subr.mxu0 0.0
        %1911 = vmatpush1.msra.mxu0 0.0
        %1912 = vmatprep.subr.mxu0 0.0
        %1913 = vmatpush1.msra.mxu0 0.0
        %1914 = vmatprep.subr.mxu0 0.0
        %1915 = vmatpush1.msra.mxu0 0.0
        %1916 = vmatprep.subr.mxu0 0.0
        %1917 = vmatpush1.msra.mxu0 0.0
        %1918 = vmatprep.subr.mxu0 0.0
        %1919 = vmatpush1.msra.mxu0 0.0
        %1920 = vmatprep.subr.mxu0 0.0
        %1921 = vmatpush1.msra.mxu0 0.0
        %1922 = vmatprep.subr.mxu0 0.0
        %1923 = vmatpush1.msra.mxu0 0.0
        %1924 = vmatprep.subr.mxu0 0.0
        %1925 = vmatpush1.msra.mxu0 0.0
        %1926 = vmatprep.subr.mxu0 0.0
        %1927 = vmatpush1.msra.mxu0 0.0
        %1928 = vmatprep.subr.mxu0 0.0
        %1929 = vmatpush1.msra.mxu0 0.0
        %1930 = vmatprep.subr.mxu0 0.0
        %1931 = vmatpush1.msra.mxu0 0.0
        %1932 = vmatprep.subr.mxu0 0.0
        %1933 = vmatpush1.msra.mxu0 0.0
        %1934 = vmatprep.subr.mxu0 0.0
        %1935 = vmatpush1.msra.mxu0 0.0
        %1936 = vmatprep.subr.mxu0 0.0
        %1937 = vmatpush1.msra.mxu0 0.0
        %1938 = vmatprep.subr.mxu0 0.0
        %1939 = vmatpush1.msra.mxu0 0.0
        %1940 = vmatprep.subr.mxu0 0.0
        %1941 = vmatpush1.msra.mxu0 0.0
        %1942 = vmatprep.subr.mxu0 0.0
        %1943 = vmatpush1.msra.mxu0 0.0
        %1944 = vmatprep.subr.mxu0 0.0
        %1945 = vmatpush1.msra.mxu0 0.0
        %1946 = vmatprep.mubr.f32.mxu0 0.0
        %v1947 = vand.u32 %v1718, 4294901760
        %v1948 = vsub.f32 %v1718, %v1947
        %1949 = vmatmul.mubr.f32.gmra.mrb[0].mxu0 %v1948
        %v1950 = vpop.f32.mrb[0].mxu0
        %v1951 = vadd.f32 %v1875, %v1950
        %v1952 = vpop.f32.mrb[0].mxu0
        %1953 = vdwg.mxu0
        %1954 = vmatprep.subr.mxu0 0.0
        %v1955 = vand.u32 %v1715, 4294901760
        %1956 = vmatpush1.msra.mxu0 %v1955
        %1957 = vmatprep.subr.mxu0 0.0
        %v1958 = vand.u32 %v1716, 4294901760
        %1959 = vmatpush1.msra.mxu0 %v1958
        %1960 = vmatprep.subr.mxu0 0.0
        %1961 = vmatpush1.msra.mxu0 0.0
        %1962 = vmatprep.subr.mxu0 0.0
        %1963 = vmatpush1.msra.mxu0 0.0
        %1964 = vmatprep.subr.mxu0 0.0
        %1965 = vmatpush1.msra.mxu0 0.0
        %1966 = vmatprep.subr.mxu0 0.0
        %1967 = vmatpush1.msra.mxu0 0.0
        %1968 = vmatprep.subr.mxu0 0.0
        %1969 = vmatpush1.msra.mxu0 0.0
        %1970 = vmatprep.subr.mxu0 0.0
        %1971 = vmatpush1.msra.mxu0 0.0
        %1972 = vmatprep.subr.mxu0 0.0
        %1973 = vmatpush1.msra.mxu0 0.0
        %1974 = vmatprep.subr.mxu0 0.0
        %1975 = vmatpush1.msra.mxu0 0.0
        %1976 = vmatprep.subr.mxu0 0.0
        %1977 = vmatpush1.msra.mxu0 0.0
        %1978 = vmatprep.subr.mxu0 0.0
        %1979 = vmatpush1.msra.mxu0 0.0
        %1980 = vmatprep.subr.mxu0 0.0
        %1981 = vmatpush1.msra.mxu0 0.0
        %1982 = vmatprep.subr.mxu0 0.0
        %1983 = vmatpush1.msra.mxu0 0.0
        %1984 = vmatprep.subr.mxu0 0.0
        %1985 = vmatpush1.msra.mxu0 0.0
        %1986 = vmatprep.subr.mxu0 0.0
        %1987 = vmatpush1.msra.mxu0 0.0
        %1988 = vmatprep.subr.mxu0 0.0
        %1989 = vmatpush1.msra.mxu0 0.0
        %1990 = vmatprep.subr.mxu0 0.0
        %1991 = vmatpush1.msra.mxu0 0.0
        %1992 = vmatprep.subr.mxu0 0.0
        %1993 = vmatpush1.msra.mxu0 0.0
        %1994 = vmatprep.subr.mxu0 0.0
        %1995 = vmatpush1.msra.mxu0 0.0
        %1996 = vmatprep.subr.mxu0 0.0
        %1997 = vmatpush1.msra.mxu0 0.0
        %1998 = vmatprep.subr.mxu0 0.0
        %1999 = vmatpush1.msra.mxu0 0.0
        %2000 = vmatprep.subr.mxu0 0.0
        %2001 = vmatpush1.msra.mxu0 0.0
        %2002 = vmatprep.subr.mxu0 0.0
        %2003 = vmatpush1.msra.mxu0 0.0
        %2004 = vmatprep.subr.mxu0 0.0
        %2005 = vmatpush1.msra.mxu0 0.0
        %2006 = vmatprep.subr.mxu0 0.0
        %2007 = vmatpush1.msra.mxu0 0.0
        %2008 = vmatprep.subr.mxu0 0.0
        %2009 = vmatpush1.msra.mxu0 0.0
        %2010 = vmatprep.subr.mxu0 0.0
        %2011 = vmatpush1.msra.mxu0 0.0
        %2012 = vmatprep.subr.mxu0 0.0
        %2013 = vmatpush1.msra.mxu0 0.0
        %2014 = vmatprep.subr.mxu0 0.0
        %2015 = vmatpush1.msra.mxu0 0.0
        %2016 = vmatprep.subr.mxu0 0.0
        %2017 = vmatpush1.msra.mxu0 0.0
        %2018 = vmatprep.subr.mxu0 0.0
        %2019 = vmatpush1.msra.mxu0 0.0
        %2020 = vmatprep.mubr.f32.mxu0 0.0
        %v2021 = vand.u32 %v1718, 4294901760
        %v2022 = vsub.f32 %v1718, %v2021
        %v2023 = vand.u32 %v2022, 4294901760
        %2024 = vmatmul.mubr.f32.gmra.mrb[0].mxu0 %v2023
        %v2025 = vpop.f32.mrb[0].mxu0
        %v2026 = vadd.f32 %v1951, %v2025
        %v2027 = vpop.f32.mrb[0].mxu0
        %2028 = vdwg.mxu0
        %2029 = vmatprep.subr.mxu0 0.0
        %v2030 = vand.u32 %v1715, 4294901760
        %v2031 = vsub.f32 %v1715, %v2030
        %v2032 = vand.u32 %v2031, 4294901760
        %2033 = vmatpush1.msra.mxu0 %v2032
        %2034 = vmatprep.subr.mxu0 0.0
        %v2035 = vand.u32 %v1716, 4294901760
        %v2036 = vsub.f32 %v1716, %v2035
        %v2037 = vand.u32 %v2036, 4294901760
        %2038 = vmatpush1.msra.mxu0 %v2037
        %2039 = vmatprep.subr.mxu0 0.0
        %2040 = vmatpush1.msra.mxu0 0.0
        %2041 = vmatprep.subr.mxu0 0.0
        %2042 = vmatpush1.msra.mxu0 0.0
        %2043 = vmatprep.subr.mxu0 0.0
        %2044 = vmatpush1.msra.mxu0 0.0
        %2045 = vmatprep.subr.mxu0 0.0
        %2046 = vmatpush1.msra.mxu0 0.0
        %2047 = vmatprep.subr.mxu0 0.0
        %2048 = vmatpush1.msra.mxu0 0.0
        %2049 = vmatprep.subr.mxu0 0.0
        %2050 = vmatpush1.msra.mxu0 0.0
        %2051 = vmatprep.subr.mxu0 0.0
        %2052 = vmatpush1.msra.mxu0 0.0
        %2053 = vmatprep.subr.mxu0 0.0
        %2054 = vmatpush1.msra.mxu0 0.0
        %2055 = vmatprep.subr.mxu0 0.0
        %2056 = vmatpush1.msra.mxu0 0.0
        %2057 = vmatprep.subr.mxu0 0.0
        %2058 = vmatpush1.msra.mxu0 0.0
        %2059 = vmatprep.subr.mxu0 0.0
        %2060 = vmatpush1.msra.mxu0 0.0
        %2061 = vmatprep.subr.mxu0 0.0
        %2062 = vmatpush1.msra.mxu0 0.0
        %2063 = vmatprep.subr.mxu0 0.0
        %2064 = vmatpush1.msra.mxu0 0.0
        %2065 = vmatprep.subr.mxu0 0.0
        %2066 = vmatpush1.msra.mxu0 0.0
        %2067 = vmatprep.subr.mxu0 0.0
        %2068 = vmatpush1.msra.mxu0 0.0
        %2069 = vmatprep.subr.mxu0 0.0
        %2070 = vmatpush1.msra.mxu0 0.0
        %2071 = vmatprep.subr.mxu0 0.0
        %2072 = vmatpush1.msra.mxu0 0.0
        %2073 = vmatprep.subr.mxu0 0.0
        %2074 = vmatpush1.msra.mxu0 0.0
        %2075 = vmatprep.subr.mxu0 0.0
        %2076 = vmatpush1.msra.mxu0 0.0
        %2077 = vmatprep.subr.mxu0 0.0
        %2078 = vmatpush1.msra.mxu0 0.0
        %2079 = vmatprep.subr.mxu0 0.0
        %2080 = vmatpush1.msra.mxu0 0.0
        %2081 = vmatprep.subr.mxu0 0.0
        %2082 = vmatpush1.msra.mxu0 0.0
        %2083 = vmatprep.subr.mxu0 0.0
        %2084 = vmatpush1.msra.mxu0 0.0
        %2085 = vmatprep.subr.mxu0 0.0
        %2086 = vmatpush1.msra.mxu0 0.0
        %2087 = vmatprep.subr.mxu0 0.0
        %2088 = vmatpush1.msra.mxu0 0.0
        %2089 = vmatprep.subr.mxu0 0.0
        %2090 = vmatpush1.msra.mxu0 0.0
        %2091 = vmatprep.subr.mxu0 0.0
        %2092 = vmatpush1.msra.mxu0 0.0
        %2093 = vmatprep.subr.mxu0 0.0
        %2094 = vmatpush1.msra.mxu0 0.0
        %2095 = vmatprep.subr.mxu0 0.0
        %2096 = vmatpush1.msra.mxu0 0.0
        %2097 = vmatprep.subr.mxu0 0.0
        %2098 = vmatpush1.msra.mxu0 0.0
        %2099 = vmatprep.mubr.f32.mxu0 0.0
        %v2100 = vand.u32 %v1718, 4294901760
        %2101 = vmatmul.mubr.f32.gmra.mrb[0].mxu0 %v2100
        %v2102 = vpop.f32.mrb[0].mxu0
        %v2103 = vadd.f32 %v2026, %v2102
        %v2104 = vpop.f32.mrb[0].mxu0
        %2105 = vdwg.mxu0
        %2106 = vmatprep.subr.mxu0 0.0
        %v2107 = vand.u32 %v1715, 4294901760
        %2108 = vmatpush1.msra.mxu0 %v2107
        %2109 = vmatprep.subr.mxu0 0.0
        %v2110 = vand.u32 %v1716, 4294901760
        %2111 = vmatpush1.msra.mxu0 %v2110
        %2112 = vmatprep.subr.mxu0 0.0
        %2113 = vmatpush1.msra.mxu0 0.0
        %2114 = vmatprep.subr.mxu0 0.0
        %2115 = vmatpush1.msra.mxu0 0.0
        %2116 = vmatprep.subr.mxu0 0.0
        %2117 = vmatpush1.msra.mxu0 0.0
        %2118 = vmatprep.subr.mxu0 0.0
        %2119 = vmatpush1.msra.mxu0 0.0
        %2120 = vmatprep.subr.mxu0 0.0
        %2121 = vmatpush1.msra.mxu0 0.0
        %2122 = vmatprep.subr.mxu0 0.0
        %2123 = vmatpush1.msra.mxu0 0.0
        %2124 = vmatprep.subr.mxu0 0.0
        %2125 = vmatpush1.msra.mxu0 0.0
        %2126 = vmatprep.subr.mxu0 0.0
        %2127 = vmatpush1.msra.mxu0 0.0
        %2128 = vmatprep.subr.mxu0 0.0
        %2129 = vmatpush1.msra.mxu0 0.0
        %2130 = vmatprep.subr.mxu0 0.0
        %2131 = vmatpush1.msra.mxu0 0.0
        %2132 = vmatprep.subr.mxu0 0.0
        %2133 = vmatpush1.msra.mxu0 0.0
        %2134 = vmatprep.subr.mxu0 0.0
        %2135 = vmatpush1.msra.mxu0 0.0
        %2136 = vmatprep.subr.mxu0 0.0
        %2137 = vmatpush1.msra.mxu0 0.0
        %2138 = vmatprep.subr.mxu0 0.0
        %2139 = vmatpush1.msra.mxu0 0.0
        %2140 = vmatprep.subr.mxu0 0.0
        %2141 = vmatpush1.msra.mxu0 0.0
        %2142 = vmatprep.subr.mxu0 0.0
        %2143 = vmatpush1.msra.mxu0 0.0
        %2144 = vmatprep.subr.mxu0 0.0
        %2145 = vmatpush1.msra.mxu0 0.0
        %2146 = vmatprep.subr.mxu0 0.0
        %2147 = vmatpush1.msra.mxu0 0.0
        %2148 = vmatprep.subr.mxu0 0.0
        %2149 = vmatpush1.msra.mxu0 0.0
        %2150 = vmatprep.subr.mxu0 0.0
        %2151 = vmatpush1.msra.mxu0 0.0
        %2152 = vmatprep.subr.mxu0 0.0
        %2153 = vmatpush1.msra.mxu0 0.0
        %2154 = vmatprep.subr.mxu0 0.0
        %2155 = vmatpush1.msra.mxu0 0.0
        %2156 = vmatprep.subr.mxu0 0.0
        %2157 = vmatpush1.msra.mxu0 0.0
        %2158 = vmatprep.subr.mxu0 0.0
        %2159 = vmatpush1.msra.mxu0 0.0
        %2160 = vmatprep.subr.mxu0 0.0
        %2161 = vmatpush1.msra.mxu0 0.0
        %2162 = vmatprep.subr.mxu0 0.0
        %2163 = vmatpush1.msra.mxu0 0.0
        %2164 = vmatprep.subr.mxu0 0.0
        %2165 = vmatpush1.msra.mxu0 0.0
        %2166 = vmatprep.subr.mxu0 0.0
        %2167 = vmatpush1.msra.mxu0 0.0
        %2168 = vmatprep.subr.mxu0 0.0
        %2169 = vmatpush1.msra.mxu0 0.0
        %2170 = vmatprep.subr.mxu0 0.0
        %2171 = vmatpush1.msra.mxu0 0.0
        %2172 = vmatprep.mubr.f32.mxu0 0.0
        %v2173 = vand.u32 %v1718, 4294901760
        %2174 = vmatmul.mubr.f32.gmra.mrb[0].mxu0 %v2173
        %v2175 = vpop.f32.mrb[0].mxu0
        %v2176 = vadd.f32 %v2103, %v2175
        %v2177 = vpop.f32.mrb[0].mxu0
        %2178 = vdwg.mxu0
        %p2179 = scmp.eq.s32.totalorder %s22, 0
        // Predicated region
        $region37: #{tpu_custom_call.1} parent=27 // pred_check
          %p2180 = pneg %p2179
        $region38: #{tpu_custom_call.1} parent=27 // pred_check_branch
          %2182 = sbr.rel (%p2180) target = $region40
        $region39: #{tpu_custom_call.1} parent=27 // pred_region
          %vm2183 = vcmask 72704
          %2184 = vst.msk [vmem:[%s195] sm:$0xff] %vm2183, 0.0
          %2185 = vst.msk [vmem:[%s195 + $0x8] sm:$0xff] %vm2183, 0.0
          %2186 = vst.msk [vmem:[%s195 + $0x10] sm:$0xff] %vm2183, 0.0
          %2187 = vst.msk [vmem:[%s195 + $0x18] sm:$0xff] %vm2183, 0.0
        $region40: #{tpu_custom_call.1} parent=27 // pred_fallthru
          _
        %v2188 = vld [vmem:[%s195] sm:$0xff]
        %v2189 = vld [vmem:[%s195 + $0x8] sm:$0xff]
        %v2190 = vld [vmem:[%s195 + $0x10] sm:$0xff]
        %v2191 = vld [vmem:[%s195 + $0x18] sm:$0xff]
        %v2192 = vadd.f32 %v2188, %v766
        %v2193 = vadd.f32 %v2189, %v1236
        %v2194 = vadd.f32 %v2190, %v1706
        %v2195 = vadd.f32 %v2191, %v2176
        %vm2196 = vcmask 72704
        %2197 = vst.msk [vmem:[%s195] sm:$0xff] %vm2196, %v2192
        %2198 = vst.msk [vmem:[%s195 + $0x8] sm:$0xff] %vm2196, %v2193
        %2199 = vst.msk [vmem:[%s195 + $0x10] sm:$0xff] %vm2196, %v2194
        %2200 = vst.msk [vmem:[%s195 + $0x18] sm:$0xff] %vm2196, %v2195
        %p2201 = scmp.lt.s32.totalorder %s21, 1
        %s2202 = scalar_select %p2201, %s21, 1
        %s2203 = smul.addr %s2202, 4
        %s2204 = smul.addr %s2203, 8
        %s2205 = scalar_lea.vmem %s2, %s2204
        // Predicated region
        $region41: #{tpu_custom_call.1} parent=27 // pred_check
          %p2206 = pneg %p96
        $region42: #{tpu_custom_call.1} parent=27 // pred_check_branch
          %2208 = sbr.rel (%p2206) target = $region44
        $region43: #{tpu_custom_call.1} parent=27 // pred_region
          _
        $region44: #{tpu_custom_call.1} parent=27 // pred_fallthru
          _
      $region28: #{tpu_custom_call.1} parent=5 // pred_fallthru
        _
      %p2209 = scmp.le.s32.totalorder 2, %s12
      // Predicated region
      $region45: #{tpu_custom_call.1} parent=5 // pred_check
        %p2210 = pneg %p2209
      $region46: #{tpu_custom_call.1} parent=5 // pred_check_branch
        %2212 = sbr.rel (%p2210) target = $region48
      $region47: #{tpu_custom_call.1} parent=5 // pred_region
        %s2213 = ssub.s32 %s12, 2
        // Predicated region
        $region49: #{tpu_custom_call.1} parent=47 // pred_check
          %p2214 = pneg %p102
        $region50: #{tpu_custom_call.1} parent=47 // pred_check_branch
          %2216 = sbr.rel (%p2214) target = $region52
        $region51: #{tpu_custom_call.1} parent=47 // pred_region
          %p2217 = scmp.lt.s32.totalorder %s23, 1
          %s2218 = scalar_select %p2217, %s23, 1
          %s2219 = smul.addr %s2218, 4
          %s2220 = smul.addr %s2219, 8
          %s2221 = scalar_lea.vmem %s2, %s2220
        $region52: #{tpu_custom_call.1} parent=47 // pred_fallthru
          _
      $region48: #{tpu_custom_call.1} parent=5 // pred_fallthru
        _
    $region6: #{tpu_custom_call.1} parent=1 // loop_footer
      %s16 = sadd.s32 1, %s12
    $region7: #{tpu_custom_call.1} parent=1 // loop_footer_branch
      %11 = sbr.rel target = $region3
    $region8: #{tpu_custom_call.1} parent=1 // loop_exit
      _
    %2222 = vsyncpa [#allocation3], 1
    %s2223 = scalar_lea.sflag [#allocation3], 1
    %2224 = vsyncpa %s2223, 1
    %2225 = vsyncpa [#allocation5], 1

</llo_original>
